<compile_context>
chip_gen: v6e
topology: v6e:2x2x1
jax: 0.10.0
libtpu: 0.0.40
codegen_flags: <defaults>
</compile_context>

<pallas_src>
import math

import jax
import jax.numpy as jnp
import numpy as np
from jax.experimental import pallas as pl
from jax.experimental.pallas import tpu as pltpu


# --------------------------------------------------------------------------
# Pallas kernels
# --------------------------------------------------------------------------
def _upconv_bnstats_kernel(x_ref, w_ref, y_ref, stats_ref):
    """Fused (upsample x2 + 3x3 conv) as one matmul tile, with BN side stats.

    x_ref:     (tm, 9*Cin)   im2col rows of the *pre-upsample* padded input
    w_ref:     (9*Cin, tn)   merged sub-pixel weight column tile
    y_ref:     (tm, tn)      packed conv output tile (lane-dense)
    stats_ref: (1, 2, tn)    [sum, sum_of_squares] over the tm rows of this tile
    """
    acc = jnp.dot(x_ref[...], w_ref[...], preferred_element_type=jnp.float32)
    y_ref[...] = acc.astype(y_ref.dtype)                      # lane-dense store

    s = jnp.sum(acc, axis=0, keepdims=True)                   # (1, tn)
    s2 = jnp.sum(acc * acc, axis=0, keepdims=True)            # (1, tn)
    stats_ref[...] = jnp.concatenate([s, s2], axis=0)[None]   # single store


def _bn_silu_kernel(y_ref, scale_ref, shift_ref, o_ref):
    # y_ref: (tm, 4*Cout) packed; scale/shift: (1, 4*Cout) per-channel affine
    # tiled over the 4 sub-pixel groups.  GLU(cat([x, x])) == x*sigmoid(x).
    z = y_ref[...].astype(jnp.float32) * scale_ref[...] + shift_ref[...]
    o_ref[...] = (z * jax.nn.sigmoid(z)).astype(o_ref.dtype)


# --------------------------------------------------------------------------
# Tile selection
# --------------------------------------------------------------------------
def _conv_tiles(m_total, kc):
    # Column tile: lane-dense (multiple of 128); split into 2 column tiles when
    # possible so there are >= 2 parallel programs even with a single row tile
    # (keeps both v7x TensorCores busy) while M per dot stays full for v5e/v6e.
    tn = kc // 2 if (kc % 256 == 0) else kc
    # Row tile: fill MXU rows; must divide M and keep the (8,128) constraint.
    tm = math.gcd(m_total, 512)
    if tm % 8:
        tm = m_total
    return tm, tn


def _bn_row_tile(m_total):
    tm = math.gcd(m_total, 512)
    if tm % 8:
        return m_total
    if tm == m_total and m_total % 16 == 0:
        tm = m_total // 2        # >= 2 programs for v7x's two TensorCores
    return tm


# --------------------------------------------------------------------------
# pallas_call wrappers
# --------------------------------------------------------------------------
def upsample_conv3x3(x_cols, w_big, *, out_dtype=jnp.float32):
    """x_cols: (M, 9*Cin) im2col rows (batch folded into M); w_big: (9*Cin, 4*Cout).

    Returns (y_packed (M, 4*Cout), stats (n_row_tiles, 2, 4*Cout) f32).
    """
    m_total, k = x_cols.shape
    kc = w_big.shape[1]
    tm, tn = _conv_tiles(m_total, kc)
    n_rt, n_ct = m_total // tm, kc // tn
    return pl.pallas_call(
        _upconv_bnstats_kernel,
        out_shape=(
            jax.ShapeDtypeStruct((m_total, kc), out_dtype),
            jax.ShapeDtypeStruct((n_rt, 2, kc), jnp.float32),
        ),
        grid=(n_rt, n_ct),
        in_specs=[
            pl.BlockSpec((tm, k), lambda r, c: (r, 0)),
            pl.BlockSpec((k, tn), lambda r, c: (0, c)),
        ],
        out_specs=(
            pl.BlockSpec((tm, tn), lambda r, c: (r, c)),
            pl.BlockSpec((1, 2, tn), lambda r, c: (r, 0, c)),
        ),
        compiler_params=pltpu.CompilerParams(
            dimension_semantics=("parallel", "parallel")),
    )(x_cols, w_big)


def bn_silu_packed(y_packed, scale4, shift4, *, out_dtype=jnp.float32):
    """y_packed: (M, 4*Cout); scale4/shift4: (4*Cout,) per-channel affine (tiled)."""
    m_total, kc = y_packed.shape
    tm = _bn_row_tile(m_total)
    n_rt = m_total // tm
    # Alias y_packed in place (it is dead after this call) when layouts match.
    aliases = {0: 0} if y_packed.dtype == out_dtype else {}
    return pl.pallas_call(
        _bn_silu_kernel,
        out_shape=jax.ShapeDtypeStruct((m_total, kc), out_dtype),
        grid=(n_rt,),
        in_specs=[
            pl.BlockSpec((tm, kc), lambda r: (r, 0)),
            pl.BlockSpec((1, kc), lambda r: (0, 0)),
            pl.BlockSpec((1, kc), lambda r: (0, 0)),
        ],
        out_specs=pl.BlockSpec((tm, kc), lambda r: (r, 0)),
        input_output_aliases=aliases,
        compiler_params=pltpu.CompilerParams(
            dimension_semantics=("parallel",)),
    )(y_packed, scale4.reshape(1, kc), shift4.reshape(1, kc))


# --------------------------------------------------------------------------
# Weight rewrite: fold nearest-x2 upsample into the 3x3 conv (sub-pixel form)
# --------------------------------------------------------------------------
def make_upconv_weights(w):
    """w: (3, 3, Cin, Cout) HWIO kernel of the conv applied AFTER x2 nearest upsample.

    Returns W_big (9*Cin, 4*Cout) such that, with xpad = original input zero-padded
    by 1 pixel,
        y[2i+p, 2j+q, co] = sum_{rs,cs,ci} xpad[i+rs, j+cs, ci]
                              * W_big[(rs*3 + cs)*Cin + ci, (2p+q)*Cout + co]
    which is exactly conv3x3(pad=1, upsample_nearest_x2(x)).
    """
    cin, cout = w.shape[2], w.shape[3]
    # m[p, k, rs] = 1  iff  original tap k (row or col) of output parity p reads
    # padded-input offset rs;  rs = floor((p - 1 + k)/2) + 1.
    m = np.zeros((2, 3, 3), np.float32)
    for p in range(2):
        for k in range(3):
            m[p, k, (p - 1 + k) // 2 + 1] = 1.0
    m = jnp.asarray(m)
    merged = jnp.einsum("pkr,qls,klio->pqrsio", m, m, w)   # (2,2,3,3,Cin,Cout)
    w_big = jnp.transpose(merged, (2, 3, 4, 0, 1, 5)).reshape(9 * cin, 4 * cout)
    return w_big


def prepare_basic_block_params(conv_w, conv_b, gamma, beta,
                               *, compute_dtype=jnp.float32):
    """Done ONCE per weight set (outside the jitted per-call forward).

    conv_b is intentionally dropped: a per-channel constant before BatchNorm
    cancels exactly in the mean subtraction, so the block output is unchanged.
    """
    del conv_b
    w_big = make_upconv_weights(conv_w).astype(compute_dtype)   # (9*Cin, 4*Cout)
    return (w_big,
            jnp.asarray(gamma, jnp.float32),
            jnp.asarray(beta, jnp.float32))


# --------------------------------------------------------------------------
# BasicBlock forward (Pallas) and pure-JAX reference
# --------------------------------------------------------------------------
def basic_block_forward(x_nchw, prepared):
    w_big, gamma, beta = prepared
    n, cin, h, wid = x_nchw.shape
    kc = w_big.shape[1]
    cout = kc // 4

    # NCHW -> NHWC; zero-pad the *small* input by 1 (the 4x upsampled tensor is
    # never materialized: upsample + pad + conv live in the merged weights).
    x = jnp.transpose(x_nchw, (0, 2, 3, 1))
    xp = jnp.pad(x, ((0, 0), (1, 1), (1, 1), (0, 0)))

    # Wrapper-side im2col on the pre-upsample input, batch folded into M.
    cols = [xp[:, rs:rs + h, cs:cs + wid, :] for rs in range(3) for cs in range(3)]
    x_cols = jnp.concatenate(cols, axis=-1).reshape(n * h * wid, 9 * cin)
    x_cols = x_cols.astype(w_big.dtype)

    # Fused upsample+conv matmul, plus per-row-tile BN sum / sum-of-squares.
    y_packed, stats = upsample_conv3x3(x_cols, w_big)

    # BatchNorm2d training-mode statistics (biased variance) from side outputs.
    count = float(4 * n * h * wid)                         # == N * 2H * 2W
    ssum = stats[:, 0, :].sum(axis=0).reshape(4, cout).sum(axis=0)
    ssq = stats[:, 1, :].sum(axis=0).reshape(4, cout).sum(axis=0)
    mean = ssum / count
    var = jnp.maximum(ssq / count - mean * mean, 0.0)
    scale = gamma * jax.lax.rsqrt(var + 1e-5)
    shift = beta - mean * scale

    # BN apply + GLU([x,x]) == SiLU on the packed, lane-dense layout.
    z_packed = bn_silu_packed(y_packed, jnp.tile(scale, 4), jnp.tile(shift, 4))

    # Single unpack (n, i*W+j, (2p+q)*Cout+c) -> NCHW (n, c, 2i+p, 2j+q).
    # When chaining FastGAN blocks, keep the packed layout and convert once at
    # the model boundary instead of paying this transpose per block.
    z = z_packed.reshape(n, h, wid, 2, 2, cout)
    z = jnp.transpose(z, (0, 5, 1, 3, 2, 4)).reshape(n, cout, 2 * h, 2 * wid)
    return z


def basic_block_reference(x_nchw, params):
    """Pure-JAX reference (explicit upsample + lax.conv, WITH bias) for verification."""
    w, b, gamma, beta = params
    x = jnp.transpose(x_nchw, (0, 2, 3, 1))
    x = jnp.repeat(jnp.repeat(x, 2, axis=1), 2, axis=2)
    y = jax.lax.conv_general_dilated(
        x, w, window_strides=(1, 1), padding="SAME",
        dimension_numbers=("NHWC", "HWIO", "NHWC")) + b
    mean = jnp.mean(y, axis=(0, 1, 2))
    var = jnp.var(y, axis=(0, 1, 2))
    z = (y - mean) / jnp.sqrt(var + 1e-5) * gamma + beta
    z = z * jax.nn.sigmoid(z)
    return jnp.transpose(z, (0, 3, 1, 2))


# --------------------------------------------------------------------------
if __name__ == "__main__":
    key = jax.random.PRNGKey(0)
    k_x, k_w, k_b = jax.random.split(key, 3)

    # FastGAN-ish small block: 128 -> 64 channels, 8x8 -> 16x16 spatial, N=2.
    N, CH_IN, CH_OUT, H, W = 2, 128, 64, 8, 8
    x = jax.random.normal(k_x, (N, CH_IN, H, W), jnp.float32)

    bound = 1.0 / np.sqrt(CH_IN * 9)
    conv_w = jax.random.uniform(k_w, (3, 3, CH_IN, CH_OUT), jnp.float32, -bound, bound)
    conv_b = jax.random.uniform(k_b, (CH_OUT,), jnp.float32, -bound, bound)
    gamma = jnp.ones((CH_OUT,), jnp.float32)     # BatchNorm2d default affine init
    beta = jnp.zeros((CH_OUT,), jnp.float32)
    params = (conv_w, conv_b, gamma, beta)

    # Weight merge done once, outside the jitted per-call path.
    # (compute_dtype=jnp.bfloat16 for v6e/v7x production; f32 here for the check.)
    prepared = prepare_basic_block_params(conv_w, conv_b, gamma, beta,
                                          compute_dtype=jnp.float32)

    fwd = jax.jit(basic_block_forward)
    out = jax.block_until_ready(fwd(x, prepared))
    assert out.shape == (N, CH_OUT, 2 * H, 2 * W), out.shape

    ref = basic_block_reference(x, params)
    np.testing.assert_allclose(np.asarray(out), np.asarray(ref),
                               rtol=5e-4, atol=5e-4)
    # BatchNorm running-stat (momentum) buffer updates are not produced (they do
    # not affect this training-mode forward output).
    print("KERNEL_OK")
</pallas_src>

<mosaic_0001>
module attributes {stable_mosaic.version = 11 : i64} {
  func.func @_upconv_bnstats_kernel(%arg0: i32, %arg1: i32, %arg2: memref<128x1152xf32, #tpu.memory_space<vmem>>, %arg3: memref<1152x128xf32, #tpu.memory_space<vmem>>, %arg4: memref<128x128xf32, #tpu.memory_space<vmem>>, %arg5: memref<1x2x128xf32, #tpu.memory_space<vmem>>) attributes {dimension_semantics = [#tpu.dimension_semantics<parallel>, #tpu.dimension_semantics<parallel>], iteration_bounds = array<i64: 1, 2>, scalar_prefetch = 0 : i64, scratch_operands = 0 : i64, tpu.core_type = #tpu.core_type<tc>, window_params = [{transform_indices = @transform_0, window_bounds = array<i64: 128, 1152>}, {transform_indices = @transform_1, window_bounds = array<i64: 1152, 128>}, {transform_indices = @transform_2, window_bounds = array<i64: 128, 128>}, {transform_indices = @transform_3, window_bounds = array<i64: 1, 2, 128>}]} {
    %c0 = arith.constant 0 : index
    %c0_0 = arith.constant 0 : index
    %0 = vector.load %arg2[%c0, %c0_0] : memref<128x1152xf32, #tpu.memory_space<vmem>>, vector<128x1152xf32>
    %c0_1 = arith.constant 0 : index
    %c0_2 = arith.constant 0 : index
    %1 = vector.load %arg3[%c0_1, %c0_2] : memref<1152x128xf32, #tpu.memory_space<vmem>>, vector<1152x128xf32>
    %cst = arith.constant dense<0.000000e+00> : vector<128x128xf32>
    %2 = tpu.matmul %0, %1, %cst {dimension_numbers = #tpu.dot_dimension_numbers<[1], [0], [0], [1], [0, 0, 1, 1], [], []>} : vector<128x1152xf32>, vector<1152x128xf32>, vector<128x128xf32> -> vector<128x128xf32>
    %c0_3 = arith.constant 0 : index
    %c0_4 = arith.constant 0 : index
    %3 = vector.load %arg4[%c0_3, %c0_4] : memref<128x128xf32, #tpu.memory_space<vmem>>, vector<128x128xf32>
    tpu.vector_store %arg4[%c0_3, %c0_4], %2 {strides = array<i32>} : memref<128x128xf32, #tpu.memory_space<vmem>>, vector<128x128xf32>,
    %cst_5 = arith.constant dense<0.000000e+00> : vector<128xf32>
    %4 = vector.multi_reduction <add>, %2, %cst_5 [0] : vector<128x128xf32> to vector<128xf32>
    %5 = vector.shape_cast %4 : vector<128xf32> to vector<1x128xf32>
    %6 = arith.mulf %2, %2 : vector<128x128xf32>
    %cst_6 = arith.constant dense<0.000000e+00> : vector<128xf32>
    %7 = vector.multi_reduction <add>, %6, %cst_6 [0] : vector<128x128xf32> to vector<128xf32>
    %8 = vector.shape_cast %7 : vector<128xf32> to vector<1x128xf32>
    %9 = tpu.concatenate %5, %8 in 0 : vector<1x128xf32>, vector<1x128xf32> -> vector<2x128xf32>
    %10 = vector.shape_cast %9 : vector<2x128xf32> to vector<1x2x128xf32>
    %c0_7 = arith.constant 0 : index
    %c0_8 = arith.constant 0 : index
    %c0_9 = arith.constant 0 : index
    %11 = vector.load %arg5[%c0_7, %c0_8, %c0_9] : memref<1x2x128xf32, #tpu.memory_space<vmem>>, vector<1x2x128xf32>
    tpu.vector_store %arg5[%c0_7, %c0_8, %c0_9], %10 {strides = array<i32>} : memref<1x2x128xf32, #tpu.memory_space<vmem>>, vector<1x2x128xf32>,
    return
  }
  func.func @transform_0(%arg0: i32, %arg1: i32) -> (i32, i32) {
    %c0_i32 = arith.constant 0 : i32
    %c0_i32_0 = arith.constant 0 : i32
    return %arg0, %c0_i32 : i32, i32
  }
  func.func @transform_1(%arg0: i32, %arg1: i32) -> (i32, i32) {
    %c0_i32 = arith.constant 0 : i32
    %c0_i32_0 = arith.constant 0 : i32
    return %c0_i32, %arg1 : i32, i32
  }
  func.func @transform_2(%arg0: i32, %arg1: i32) -> (i32, i32) {
    %c0_i32 = arith.constant 0 : i32
    return %arg0, %arg1 : i32, i32
  }
  func.func @transform_3(%arg0: i32, %arg1: i32) -> (i32, i32, i32) {
    %c0_i32 = arith.constant 0 : i32
    %c0_i32_0 = arith.constant 0 : i32
    return %arg0, %c0_i32, %arg1 : i32, i32, i32
  }
}

module attributes {stable_mosaic.version = 11 : i64} {
  func.func @_bn_silu_kernel(%arg0: i32, %arg1: memref<64x256xf32, #tpu.memory_space<vmem>>, %arg2: memref<1x256xf32, #tpu.memory_space<vmem>>, %arg3: memref<1x256xf32, #tpu.memory_space<vmem>>, %arg4: memref<64x256xf32, #tpu.memory_space<vmem>>) attributes {dimension_semantics = [#tpu.dimension_semantics<parallel>], iteration_bounds = array<i64: 2>, scalar_prefetch = 0 : i64, scratch_operands = 0 : i64, tpu.core_type = #tpu.core_type<tc>, window_params = [{transform_indices = @transform_0, window_bounds = array<i64: 64, 256>}, {pipeline_mode = #tpu.pipeline_mode<synchronous>, transform_indices = @transform_1, window_bounds = array<i64: 1, 256>}, {pipeline_mode = #tpu.pipeline_mode<synchronous>, transform_indices = @transform_2, window_bounds = array<i64: 1, 256>}, {transform_indices = @transform_3, window_bounds = array<i64: 64, 256>}]} {
    %c0 = arith.constant 0 : index
    %c0_0 = arith.constant 0 : index
    %0 = vector.load %arg1[%c0, %c0_0] : memref<64x256xf32, #tpu.memory_space<vmem>>, vector<64x256xf32>
    %c0_1 = arith.constant 0 : index
    %c0_2 = arith.constant 0 : index
    %1 = vector.load %arg2[%c0_1, %c0_2] : memref<1x256xf32, #tpu.memory_space<vmem>>, vector<1x256xf32>
    %2 = vector.broadcast %1 : vector<1x256xf32> to vector<64x256xf32>
    %3 = arith.mulf %0, %2 : vector<64x256xf32>
    %c0_3 = arith.constant 0 : index
    %c0_4 = arith.constant 0 : index
    %4 = vector.load %arg3[%c0_3, %c0_4] : memref<1x256xf32, #tpu.memory_space<vmem>>, vector<1x256xf32>
    %5 = vector.broadcast %4 : vector<1x256xf32> to vector<64x256xf32>
    %6 = arith.addf %3, %5 : vector<64x256xf32>
    %7 = arith.negf %6 : vector<64x256xf32>
    %8 = math.exp %7 : vector<64x256xf32>
    %cst = arith.constant 1.000000e+00 : f32
    %9 = vector.broadcast %cst : f32 to vector<64x256xf32>
    %10 = arith.addf %9, %8 : vector<64x256xf32>
    %11 = arith.divf %9, %10 : vector<64x256xf32>
    %12 = arith.mulf %6, %11 : vector<64x256xf32>
    %c0_5 = arith.constant 0 : index
    %c0_6 = arith.constant 0 : index
    %13 = vector.load %arg4[%c0_5, %c0_6] : memref<64x256xf32, #tpu.memory_space<vmem>>, vector<64x256xf32>
    tpu.vector_store %arg4[%c0_5, %c0_6], %12 {strides = array<i32>} : memref<64x256xf32, #tpu.memory_space<vmem>>, vector<64x256xf32>,
    return
  }
  func.func @transform_0(%arg0: i32) -> (i32, i32) {
    %c0_i32 = arith.constant 0 : i32
    %c0_i32_0 = arith.constant 0 : i32
    return %arg0, %c0_i32 : i32, i32
  }
  func.func @transform_1(%arg0: i32) -> (i32, i32) {
    %c0_i32 = arith.constant 0 : i32
    %c0_i32_0 = arith.constant 0 : i32
    %c0_i32_1 = arith.constant 0 : i32
    return %c0_i32, %c0_i32_0 : i32, i32
  }
  func.func @transform_2(%arg0: i32) -> (i32, i32) {
    %c0_i32 = arith.constant 0 : i32
    %c0_i32_0 = arith.constant 0 : i32
    %c0_i32_1 = arith.constant 0 : i32
    return %c0_i32, %c0_i32_0 : i32, i32
  }
  func.func @transform_3(%arg0: i32) -> (i32, i32) {
    %c0_i32 = arith.constant 0 : i32
    %c0_i32_0 = arith.constant 0 : i32
    return %arg0, %c0_i32 : i32, i32
  }
}

</mosaic_0001>

<llo_original>
// kernel: tile.19
$region0: #{tile.19}
  %s0 = inlined_call_operand.vmem [shape: f32[4,64], index: 0, kind: input, shape index: {}]
  %s1 = inlined_call_operand.vmem [shape: f32[1,256], index: 1, kind: output, shape index: {}]
  $region1: #{tile.19} parent=0
    #allocation0 [shape = 'u8[8192]{0}', space=vmem, size = 0x2000, scoped, tag = 'scoped mem for output reshape']
    #allocation1 [shape = 'u8[4096]{0}', space=vmem, size = 0x1000, scoped, tag = 'scoped mem for input reshape']
    %s3 = sshll.u32 1, 4
    %s4 = ssub.s32 %s3, 1
    %v5 = vld [vmem:[%s0] sm:%s4]
    %6 = vst [vmem:[#allocation1] sm:%s4] %v5
    %s7 = smov 3
    %v8 = vld [vmem:[#allocation1] ss:$2 sm:%s7]
    %vm9 = vcmask 523264
    %10 = vst.msk [vmem:[#allocation0] ss:$8 sm:$0x3] %vm9, %v8
    %s11 = scalar_lea.vmem [#allocation1], 1
    %s12 = smov 3
    %v13 = vld [vmem:[%s11] ss:$2 sm:%s12]
    %14 = vrot.lane.b32.xlu0 %v13, 64
    %v15 = vpop.permute.xlu0 %14
    %vm16 = vcmask 1048064
    %17 = vst.msk [vmem:[#allocation0] ss:$8 sm:$0x3] %vm16, %v15
    %s19 = sshll.u32 1, 1
    %s20 = ssub.s32 %s19, 1
    %v22 = vld [vmem:[#allocation0] sm:%s20]
    %s23 = sshll.u32 1, 1
    %s24 = ssub.s32 %s23, 1
    %25 = vst [vmem:[%s1] sm:%s24] %v22
    %s26 = scalar_lea.vmem [#allocation0], 8
    %v27 = vld [vmem:[%s26] sm:%s20]
    %s28 = sshll.u32 1, 1
    %s29 = ssub.s32 %s28, 1
    %s30 = scalar_lea.vmem %s1, 1
    %31 = vst [vmem:[%s30] sm:%s29] %v27

// kernel: tile.17
$region0: #{tile.17}
  #allocation0 [shape = 's32[1]{0}', space=sflag, size = 0x4, scoped, tag = 'scoped memory for tile.17']
  %s0 = inlined_call_operand.vmem [shape: f32[64], index: 0, kind: input, shape index: {}]
  %s1 = inlined_call_operand.vmem [shape: f32[4,64], index: 1, kind: output, shape index: {}]
  // Predicated region
  $region2: #{tile.17} parent=0 // pred_check
    _
  $region3: #{tile.17} parent=0 // pred_check_branch
    %3 = sbr.rel (0) target = $region5
  $region4: #{tile.17} parent=0 // pred_region
    _
  $region5: #{tile.17} parent=0 // pred_fallthru
    _
  %v4 = vld [vmem:[%s0] ss:$0 sm:$0xff]
  %5 = vst [vmem:[%s1] sm:$0xf] %v4

// kernel: basic_block_forward.3
$region0: #{basic_block_forward.3}
  #allocation0 [shape = 'u32[]', space=smem, size = 0x4, offset = 0x4, fixed_abs, tag = 'smem constant byte address 0x4 - core index']
  #allocation1 [shape = 'u32[144,128]{1,0:T(1,128)}', space=vmem, size = 0x12000, scoped, tag = 'internal scratch']
  %s0 = inlined_call_operand.vmem [shape: f32[128,256], index: 0, kind: input, shape index: {}, may-alias: {0,3}]
  %s1 = inlined_call_operand.vmem [shape: f32[1,256], index: 1, kind: input, shape index: {}]
  %s2 = inlined_call_operand.vmem [shape: f32[1,256], index: 2, kind: input, shape index: {}]
  %s3 = inlined_call_operand.vmem [shape: f32[128,256], index: 3, kind: output, shape index: {}, may-alias: {0,3}]
  %s4 = sld [smem:[#allocation0]]
  $region45: #{basic_block_forward.3} parent=0
    _
  %s6 = ssub.s32 1, %s4
  %s7 = scalar_select 0, %s6, %s4
  loop: start=0, step=1, limit=4
  $region2: #{basic_block_forward.3} parent=0 // loop_pre_header
    _
  $region3: #{basic_block_forward.3} parent=0 // loop_header
    %s9 = sphi 0, %s13
    %p10 = scmp.ge.s32.totalorder %s9, 4
    %s19 = sphi 0, %s21
    %s22 = sphi 0, %s19
    %s23 = sphi 0, %s22
    %s39 = sphi 0, %s23
    %s43 = sphi 0, %s43
    %s45 = sphi 0, %s43
    %s46 = sphi 0, %s45
    %s60 = sphi 0, %s46
    %s64 = sphi 0, %s64
    %s66 = sphi 0, %s64
    %s67 = sphi 0, %s66
    %s81 = sphi 0, %s67
    %s87 = sphi 0, %s89
    %s90 = sphi 0, %s87
    %s91 = sphi 0, %s90
    %s107 = sphi 0, %s91
  $region4: #{basic_block_forward.3} parent=0 // loop_header_branch
    %12 = sbr.rel (%p10) target = $region8
  $region5: #{basic_block_forward.3} parent=0 // loop_body
    %s14 = ssub.s32 %s9, 1
    %s15 = ssub.s32 %s9, 2
    %s16 = sadd.s32 %s9, 1
    %s17 = ssub.s32 %s9, %s16
    %p18 = scmp.eq.s32.totalorder %s17, 0
    %s20 = sadd.s32 %s19, 1
    %s21 = scalar_select %p18, %s19, %s20
    %p24 = pneg %p18
    %p25 = scmp.eq.s32.totalorder %s9, 1
    %p26 = por %p24, %p25
    %p27 = scmp.ne.s32.totalorder %s19, %s22
    %p28 = scmp.eq.s32.totalorder %s9, 0
    %p29 = por %p27, %p28
    %p30 = scmp.ne.s32.totalorder %s19, %s22
    %p31 = scmp.eq.s32.totalorder %s14, 1
    %p32 = por %p30, %p31
    %p33 = scmp.ne.s32.totalorder %s22, %s23
    %p34 = scmp.eq.s32.totalorder %s14, 0
    %p35 = por %p33, %p34
    %p36 = scmp.ne.s32.totalorder %s22, %s23
    %p37 = scmp.eq.s32.totalorder %s15, 1
    %p38 = por %p36, %p37
    %p40 = scmp.ne.s32.totalorder %s23, %s39
    %p41 = scmp.eq.s32.totalorder %s15, 0
    %p42 = por %p40, %p41
    %s44 = sadd.s32 %s43, 1
    %p47 = scmp.eq.s32.totalorder %s9, 1
    %p48 = scmp.ne.s32.totalorder %s43, %s45
    %p49 = scmp.eq.s32.totalorder %s9, 0
    %p50 = por %p48, %p49
    %p51 = scmp.ne.s32.totalorder %s43, %s45
    %p52 = scmp.eq.s32.totalorder %s14, 1
    %p53 = por %p51, %p52
    %p54 = scmp.ne.s32.totalorder %s45, %s46
    %p55 = scmp.eq.s32.totalorder %s14, 0
    %p56 = por %p54, %p55
    %p57 = scmp.ne.s32.totalorder %s45, %s46
    %p58 = scmp.eq.s32.totalorder %s15, 1
    %p59 = por %p57, %p58
    %p61 = scmp.ne.s32.totalorder %s46, %s60
    %p62 = scmp.eq.s32.totalorder %s15, 0
    %p63 = por %p61, %p62
    %s65 = sadd.s32 %s64, 1
    %p68 = scmp.eq.s32.totalorder %s9, 1
    %p69 = scmp.ne.s32.totalorder %s64, %s66
    %p70 = scmp.eq.s32.totalorder %s9, 0
    %p71 = por %p69, %p70
    %p72 = scmp.ne.s32.totalorder %s64, %s66
    %p73 = scmp.eq.s32.totalorder %s14, 1
    %p74 = por %p72, %p73
    %p75 = scmp.ne.s32.totalorder %s66, %s67
    %p76 = scmp.eq.s32.totalorder %s14, 0
    %p77 = por %p75, %p76
    %p78 = scmp.ne.s32.totalorder %s66, %s67
    %p79 = scmp.eq.s32.totalorder %s15, 1
    %p80 = por %p78, %p79
    %p82 = scmp.ne.s32.totalorder %s67, %s81
    %p83 = scmp.eq.s32.totalorder %s15, 0
    %p84 = por %p82, %p83
    %s85 = ssub.s32 %s9, %s16
    %p86 = scmp.eq.s32.totalorder %s85, 0
    %s88 = sadd.s32 %s87, 1
    %s89 = scalar_select %p86, %s87, %s88
    %p92 = pneg %p86
    %p93 = scmp.eq.s32.totalorder %s9, 1
    %p94 = por %p92, %p93
    %p95 = scmp.ne.s32.totalorder %s87, %s90
    %p96 = scmp.eq.s32.totalorder %s9, 0
    %p97 = por %p95, %p96
    %p98 = scmp.ne.s32.totalorder %s87, %s90
    %p99 = scmp.eq.s32.totalorder %s14, 1
    %p100 = por %p98, %p99
    %p101 = scmp.ne.s32.totalorder %s90, %s91
    %p102 = scmp.eq.s32.totalorder %s14, 0
    %p103 = por %p101, %p102
    %p104 = scmp.ne.s32.totalorder %s90, %s91
    %p105 = scmp.eq.s32.totalorder %s15, 1
    %p106 = por %p104, %p105
    %p108 = scmp.ne.s32.totalorder %s91, %s107
    %p109 = scmp.eq.s32.totalorder %s15, 0
    %p110 = por %p108, %p109
    %p111 = scmp.le.s32.totalorder 1, %s9
    %p112 = scmp.lt.s32.totalorder %s9, 3
    %p113 = pnand %p111, %p112
    %p114 = pneg %p113
    // Predicated region
    $region9: #{basic_block_forward.3} parent=5 // pred_check
      _
    $region10: #{basic_block_forward.3} parent=5 // pred_check_branch
      %116 = sbr.rel (%p113) target = $region12
    $region11: #{basic_block_forward.3} parent=5 // pred_region
      %s117 = ssub.s32 %s9, 1
      // Predicated region
      $region13: #{basic_block_forward.3} parent=11 // pred_check
        %p118 = pneg %p56
      $region14: #{basic_block_forward.3} parent=11 // pred_check_branch
        %120 = sbr.rel (%p118) target = $region16
      $region15: #{basic_block_forward.3} parent=11 // pred_region
        _
      $region16: #{basic_block_forward.3} parent=11 // pred_fallthru
        _
      // Predicated region
      $region17: #{basic_block_forward.3} parent=11 // pred_check
        %p121 = pneg %p77
      $region18: #{basic_block_forward.3} parent=11 // pred_check_branch
        %123 = sbr.rel (%p121) target = $region20
      $region19: #{basic_block_forward.3} parent=11 // pred_region
        _
      $region20: #{basic_block_forward.3} parent=11 // pred_fallthru
        _
    $region12: #{basic_block_forward.3} parent=5 // pred_fallthru
      _
    %p124 = scmp.lt.s32.totalorder %s9, 2
    // Predicated region
    $region21: #{basic_block_forward.3} parent=5 // pred_check
      %p125 = pneg %p124
    $region22: #{basic_block_forward.3} parent=5 // pred_check_branch
      %127 = sbr.rel (%p125) target = $region24
    $region23: #{basic_block_forward.3} parent=5 // pred_region
      // Predicated region
      $region25: #{basic_block_forward.3} parent=23 // pred_check
        %p128 = pneg %p29
      $region26: #{basic_block_forward.3} parent=23 // pred_check_branch
        %130 = sbr.rel (%p128) target = $region28
      $region27: #{basic_block_forward.3} parent=23 // pred_region
        %s131 = smul.u32 8, %s9
        %p132 = scmp.lt.s32.totalorder %s131, 15
        %s133 = scalar_select %p132, %s131, 15
        %s134 = smul.addr %s133, 2
        %s135 = smul.addr %s134, 8
        %s136 = scalar_lea.vmem %s0, %s135
        %s137 = smul.u32 8, %s9
      $region28: #{basic_block_forward.3} parent=23 // pred_fallthru
        _
    $region24: #{basic_block_forward.3} parent=5 // pred_fallthru
      _
    %p138 = scmp.le.s32.totalorder 1, %s9
    %p139 = scmp.lt.s32.totalorder %s9, 3
    %p140 = pnand %p138, %p139
    %p141 = pneg %p140
    // Predicated region
    $region29: #{basic_block_forward.3} parent=5 // pred_check
      _
    $region30: #{basic_block_forward.3} parent=5 // pred_check_branch
      %143 = sbr.rel (%p140) target = $region32
    $region31: #{basic_block_forward.3} parent=5 // pred_region
      %s144 = ssub.s32 %s9, 1
      %s145 = smul.u32 8, %s14
      %p146 = scmp.lt.s32.totalorder %s145, 15
      %s147 = scalar_select %p146, %s145, 15
      %s148 = smul.addr %s147, 2
      %s149 = smul.addr %s148, 8
      %s150 = scalar_lea.vmem %s0, %s149
      %p151 = pneg %p35
      %p152 = pneg %p32
      %p153 = pneg %p56
      %p154 = pneg %p53
      %p155 = pneg %p77
      %p156 = pneg %p74
      %p157 = pneg %p103
      %p158 = pneg %p100
      %s159 = smul.u32 8, %s14
      %p160 = scmp.lt.s32.totalorder %s159, 15
      %s161 = scalar_select %p160, %s159, 15
      %s162 = smul.addr %s161, 2
      %s163 = smul.addr %s162, 8
      %s164 = scalar_lea.vmem %s3, %s163
      %s165 = smul.u32 8, %s14
      %p166 = scmp.lt.s32.totalorder %s165, 15
      %s167 = scalar_select %p166, %s165, 15
      %s168 = smul.addr %s167, 2
      %s169 = smul.addr %s168, 8
      %s170 = scalar_lea.vmem %s0, %s169
      %s171 = smul.u32 8, %s14
      %s172 = smul.u32 8, %s14
      %p173 = scmp.lt.s32.totalorder %s172, 15
      %s174 = scalar_select %p173, %s172, 15
      %s175 = smul.addr %s174, 2
      %s176 = smul.addr %s175, 8
      %s177 = scalar_lea.vmem %s3, %s176
      %s178 = smul.u32 8, %s14
      %v179 = vld [vmem:[%s170] sm:$0xff]
      %v180 = vld [vmem:[%s170 + $0x8] sm:$0xff]
      %v181 = vld [vmem:[%s170 + $0x10] sm:$0xff]
      %v182 = vld [vmem:[%s170 + $0x18] sm:$0xff]
      %v183 = vld [vmem:[%s170 + $0x20] sm:$0xff]
      %v184 = vld [vmem:[%s170 + $0x28] sm:$0xff]
      %v185 = vld [vmem:[%s170 + $0x30] sm:$0xff]
      %v186 = vld [vmem:[%s170 + $0x38] sm:$0xff]
      %v187 = vld [vmem:[%s170 + $0x40] sm:$0xff]
      %v188 = vld [vmem:[%s170 + $0x48] sm:$0xff]
      %v189 = vld [vmem:[%s170 + $0x50] sm:$0xff]
      %v190 = vld [vmem:[%s170 + $0x58] sm:$0xff]
      %v191 = vld [vmem:[%s170 + $0x60] sm:$0xff]
      %v192 = vld [vmem:[%s170 + $0x68] sm:$0xff]
      %v193 = vld [vmem:[%s170 + $0x70] sm:$0xff]
      %v194 = vld [vmem:[%s170 + $0x78] sm:$0xff]
      %v195 = vld [vmem:[%s1] sm:$0x3]
      %v197 = vlaneseq
      %v198 = vshrl.u32 %v197, 7
      %v199 = vsub.s32 0, %v198
      %v200 = vrot.slane %v195, %v199
      %v201 = vlaneseq
      %v202 = vshrl.u32 %v201, 7
      %v203 = vsub.s32 1, %v202
      %v204 = vrot.slane %v195, %v203
      %v207 = vmul.f32 %v179, %v200
      %v208 = vmul.f32 %v180, %v204
      %v209 = vmul.f32 %v181, %v200
      %v210 = vmul.f32 %v182, %v204
      %v211 = vmul.f32 %v183, %v200
      %v212 = vmul.f32 %v184, %v204
      %v213 = vmul.f32 %v185, %v200
      %v214 = vmul.f32 %v186, %v204
      %v215 = vmul.f32 %v187, %v200
      %v216 = vmul.f32 %v188, %v204
      %v217 = vmul.f32 %v189, %v200
      %v218 = vmul.f32 %v190, %v204
      %v219 = vmul.f32 %v191, %v200
      %v220 = vmul.f32 %v192, %v204
      %v221 = vmul.f32 %v193, %v200
      %v222 = vmul.f32 %v194, %v204
      %v223 = vld [vmem:[%s2] sm:$0x3]
      %v225 = vlaneseq
      %v226 = vshrl.u32 %v225, 7
      %v227 = vsub.s32 0, %v226
      %v228 = vrot.slane %v223, %v227
      %v229 = vlaneseq
      %v230 = vshrl.u32 %v229, 7
      %v231 = vsub.s32 1, %v230
      %v232 = vrot.slane %v223, %v231
      %v235 = vadd.f32 %v207, %v228
      %v236 = vadd.f32 %v208, %v232
      %v237 = vadd.f32 %v209, %v228
      %v238 = vadd.f32 %v210, %v232
      %v239 = vadd.f32 %v211, %v228
      %v240 = vadd.f32 %v212, %v232
      %v241 = vadd.f32 %v213, %v228
      %v242 = vadd.f32 %v214, %v232
      %v243 = vadd.f32 %v215, %v228
      %v244 = vadd.f32 %v216, %v232
      %v245 = vadd.f32 %v217, %v228
      %v246 = vadd.f32 %v218, %v232
      %v247 = vadd.f32 %v219, %v228
      %v248 = vadd.f32 %v220, %v232
      %v249 = vadd.f32 %v221, %v228
      %v250 = vadd.f32 %v222, %v232
      %v251 = vxor.u32 %v235, 2147483648
      %v252 = vxor.u32 %v236, 2147483648
      %v253 = vxor.u32 %v237, 2147483648
      %v254 = vxor.u32 %v238, 2147483648
      %v255 = vxor.u32 %v239, 2147483648
      %v256 = vxor.u32 %v240, 2147483648
      %v257 = vxor.u32 %v241, 2147483648
      %v258 = vxor.u32 %v242, 2147483648
      %v259 = vxor.u32 %v243, 2147483648
      %v260 = vxor.u32 %v244, 2147483648
      %v261 = vxor.u32 %v245, 2147483648
      %v262 = vxor.u32 %v246, 2147483648
      %v263 = vxor.u32 %v247, 2147483648
      %v264 = vxor.u32 %v248, 2147483648
      %v265 = vxor.u32 %v249, 2147483648
      %v266 = vxor.u32 %v250, 2147483648
      %v267 = vmul.f32 %v251, 1.442695
      %v268 = vpow.pop %v267
      %v269 = vmul.f32 %v252, 1.442695
      %v270 = vpow.pop %v269
      %v271 = vmul.f32 %v253, 1.442695
      %v272 = vpow.pop %v271
      %v273 = vmul.f32 %v254, 1.442695
      %v274 = vpow.pop %v273
      %v275 = vmul.f32 %v255, 1.442695
      %v276 = vpow.pop %v275
      %v277 = vmul.f32 %v256, 1.442695
      %v278 = vpow.pop %v277
      %v279 = vmul.f32 %v257, 1.442695
      %v280 = vpow.pop %v279
      %v281 = vmul.f32 %v258, 1.442695
      %v282 = vpow.pop %v281
      %v283 = vmul.f32 %v259, 1.442695
      %v284 = vpow.pop %v283
      %v285 = vmul.f32 %v260, 1.442695
      %v286 = vpow.pop %v285
      %v287 = vmul.f32 %v261, 1.442695
      %v288 = vpow.pop %v287
      %v289 = vmul.f32 %v262, 1.442695
      %v290 = vpow.pop %v289
      %v291 = vmul.f32 %v263, 1.442695
      %v292 = vpow.pop %v291
      %v293 = vmul.f32 %v264, 1.442695
      %v294 = vpow.pop %v293
      %v295 = vmul.f32 %v265, 1.442695
      %v296 = vpow.pop %v295
      %v297 = vmul.f32 %v266, 1.442695
      %v298 = vpow.pop %v297
      %v299 = vadd.f32 %v268, 1.0
      %v300 = vadd.f32 %v270, 1.0
      %v301 = vadd.f32 %v272, 1.0
      %v302 = vadd.f32 %v274, 1.0
      %v303 = vadd.f32 %v276, 1.0
      %v304 = vadd.f32 %v278, 1.0
      %v305 = vadd.f32 %v280, 1.0
      %v306 = vadd.f32 %v282, 1.0
      %v307 = vadd.f32 %v284, 1.0
      %v308 = vadd.f32 %v286, 1.0
      %v309 = vadd.f32 %v288, 1.0
      %v310 = vadd.f32 %v290, 1.0
      %v311 = vadd.f32 %v292, 1.0
      %v312 = vadd.f32 %v294, 1.0
      %v313 = vadd.f32 %v296, 1.0
      %v314 = vadd.f32 %v298, 1.0
      %v315 = vrcp.pop %v299
      %v316 = vmul.f32 1.0, %v315
      %v317 = vrcp.pop %v300
      %v318 = vmul.f32 1.0, %v317
      %v319 = vrcp.pop %v301
      %v320 = vmul.f32 1.0, %v319
      %v321 = vrcp.pop %v302
      %v322 = vmul.f32 1.0, %v321
      %v323 = vrcp.pop %v303
      %v324 = vmul.f32 1.0, %v323
      %v325 = vrcp.pop %v304
      %v326 = vmul.f32 1.0, %v325
      %v327 = vrcp.pop %v305
      %v328 = vmul.f32 1.0, %v327
      %v329 = vrcp.pop %v306
      %v330 = vmul.f32 1.0, %v329
      %v331 = vrcp.pop %v307
      %v332 = vmul.f32 1.0, %v331
      %v333 = vrcp.pop %v308
      %v334 = vmul.f32 1.0, %v333
      %v335 = vrcp.pop %v309
      %v336 = vmul.f32 1.0, %v335
      %v337 = vrcp.pop %v310
      %v338 = vmul.f32 1.0, %v337
      %v339 = vrcp.pop %v311
      %v340 = vmul.f32 1.0, %v339
      %v341 = vrcp.pop %v312
      %v342 = vmul.f32 1.0, %v341
      %v343 = vrcp.pop %v313
      %v344 = vmul.f32 1.0, %v343
      %v345 = vrcp.pop %v314
      %v346 = vmul.f32 1.0, %v345
      %v347 = vmul.f32 %v235, %v316
      %v348 = vmul.f32 %v236, %v318
      %v349 = vmul.f32 %v237, %v320
      %v350 = vmul.f32 %v238, %v322
      %v351 = vmul.f32 %v239, %v324
      %v352 = vmul.f32 %v240, %v326
      %v353 = vmul.f32 %v241, %v328
      %v354 = vmul.f32 %v242, %v330
      %v355 = vmul.f32 %v243, %v332
      %v356 = vmul.f32 %v244, %v334
      %v357 = vmul.f32 %v245, %v336
      %v358 = vmul.f32 %v246, %v338
      %v359 = vmul.f32 %v247, %v340
      %v360 = vmul.f32 %v248, %v342
      %v361 = vmul.f32 %v249, %v344
      %v362 = vmul.f32 %v250, %v346
      %363 = vst [vmem:[%s177] sm:$0xff] %v347
      %364 = vst [vmem:[%s177 + $0x8] sm:$0xff] %v348
      %365 = vst [vmem:[%s177 + $0x10] sm:$0xff] %v349
      %366 = vst [vmem:[%s177 + $0x18] sm:$0xff] %v350
      %367 = vst [vmem:[%s177 + $0x20] sm:$0xff] %v351
      %368 = vst [vmem:[%s177 + $0x28] sm:$0xff] %v352
      %369 = vst [vmem:[%s177 + $0x30] sm:$0xff] %v353
      %370 = vst [vmem:[%s177 + $0x38] sm:$0xff] %v354
      %371 = vst [vmem:[%s177 + $0x40] sm:$0xff] %v355
      %372 = vst [vmem:[%s177 + $0x48] sm:$0xff] %v356
      %373 = vst [vmem:[%s177 + $0x50] sm:$0xff] %v357
      %374 = vst [vmem:[%s177 + $0x58] sm:$0xff] %v358
      %375 = vst [vmem:[%s177 + $0x60] sm:$0xff] %v359
      %376 = vst [vmem:[%s177 + $0x68] sm:$0xff] %v360
      %377 = vst [vmem:[%s177 + $0x70] sm:$0xff] %v361
      %378 = vst [vmem:[%s177 + $0x78] sm:$0xff] %v362
      %s379 = smul.u32 8, %s14
      %p380 = scmp.lt.s32.totalorder %s379, 15
      %s381 = scalar_select %p380, %s379, 15
      %s382 = smul.addr %s381, 2
      %s383 = smul.addr %s382, 8
      %s384 = scalar_lea.vmem %s3, %s383
      // Predicated region
      $region33: #{basic_block_forward.3} parent=31 // pred_check
        %p385 = pneg %p100
      $region34: #{basic_block_forward.3} parent=31 // pred_check_branch
        %387 = sbr.rel (%p385) target = $region36
      $region35: #{basic_block_forward.3} parent=31 // pred_region
        %s388 = smul.u32 8, %s14
      $region36: #{basic_block_forward.3} parent=31 // pred_fallthru
        _
    $region32: #{basic_block_forward.3} parent=5 // pred_fallthru
      _
    %p389 = scmp.le.s32.totalorder 2, %s9
    // Predicated region
    $region37: #{basic_block_forward.3} parent=5 // pred_check
      %p390 = pneg %p389
    $region38: #{basic_block_forward.3} parent=5 // pred_check_branch
      %392 = sbr.rel (%p390) target = $region40
    $region39: #{basic_block_forward.3} parent=5 // pred_region
      %s393 = ssub.s32 %s9, 2
      // Predicated region
      $region41: #{basic_block_forward.3} parent=39 // pred_check
        %p394 = pneg %p106
      $region42: #{basic_block_forward.3} parent=39 // pred_check_branch
        %396 = sbr.rel (%p394) target = $region44
      $region43: #{basic_block_forward.3} parent=39 // pred_region
        %s397 = smul.u32 8, %s15
        %p398 = scmp.lt.s32.totalorder %s397, 15
        %s399 = scalar_select %p398, %s397, 15
        %s400 = smul.addr %s399, 2
        %s401 = smul.addr %s400, 8
        %s402 = scalar_lea.vmem %s3, %s401
      $region44: #{basic_block_forward.3} parent=39 // pred_fallthru
        _
    $region40: #{basic_block_forward.3} parent=5 // pred_fallthru
      _
  $region6: #{basic_block_forward.3} parent=0 // loop_footer
    %s13 = sadd.s32 1, %s9
  $region7: #{basic_block_forward.3} parent=0 // loop_footer_branch
    %8 = sbr.rel target = $region3
  $region8: #{basic_block_forward.3} parent=0 // loop_exit
    _

// kernel: basic_block_forward.2
$region0: #{basic_block_forward.2}
  #allocation0 [shape = 'u32[]', space=smem, size = 0x4, offset = 0x4, fixed_abs, tag = 'smem constant byte address 0x4 - core index']
  #allocation1 [shape = 'u32[144,128]{1,0:T(1,128)}', space=vmem, size = 0x12000, scoped, tag = 'internal scratch']
  %s0 = inlined_call_operand.vmem [shape: f32[128,1152], index: 0, kind: input, shape index: {}]
  %s1 = inlined_call_operand.vmem [shape: f32[1152,256], index: 1, kind: input, shape index: {}]
  %s2 = inlined_call_operand.vmem [shape: f32[128,256], index: 2, kind: output, shape index: {0}]
  %s3 = inlined_call_operand.vmem [shape: f32[1,2,256], index: 3, kind: output, shape index: {1}]
  %4 = xla_tuple %s2, %s3
  %s5 = sld [smem:[#allocation0]]
  $region121: #{basic_block_forward.2} parent=0
    _
  %s7 = ssub.s32 1, %s5
  %s8 = scalar_select 0, %s7, %s5
  $region1: #{basic_block_forward.2} parent=0
    #allocation2 [shape = 'u8[1179648]{0}', space=vmem, size = 0x120000, scoped, tag = 'input window, operand 1']
    #allocation3 [shape = 'u8[131072]{0}', space=vmem, size = 0x20000, scoped, tag = 'output window, operand 0']
    loop: start=0, step=1, limit=4
    $region2: #{basic_block_forward.2} parent=1 // loop_pre_header
      _
    $region3: #{basic_block_forward.2} parent=1 // loop_header
      %s10 = sphi 0, %s14
      %p11 = scmp.ge.s32.totalorder %s10, 4
      %s17 = sphi 0, %s29
      %s18 = sphi 0, %s25
      %s19 = sphi 0, %s17
      %s20 = sphi 0, %s18
      %s21 = sphi 0, %s19
      %s22 = sphi 0, %s20
      %s32 = sphi 0, %s34
      %s35 = sphi 0, %s32
      %s36 = sphi 0, %s35
      %s52 = sphi 0, %s36
      %s58 = sphi 0, %s60
      %s61 = sphi 0, %s58
      %s62 = sphi 0, %s61
      %s78 = sphi 0, %s62
      %s86 = sphi 0, %s88
      %s89 = sphi 0, %s86
      %s90 = sphi 0, %s89
      %s106 = sphi 0, %s90
      %s114 = sphi 0, %s116
      %s117 = sphi 0, %s114
      %s118 = sphi 0, %s117
      %s134 = sphi 0, %s118
    $region4: #{basic_block_forward.2} parent=1 // loop_header_branch
      %13 = sbr.rel (%p11) target = $region8
    $region5: #{basic_block_forward.2} parent=1 // loop_body
      %s15 = ssub.s32 %s10, 1
      %s16 = ssub.s32 %s10, 2
      %s23 = sadd.s32 1, %s18
      %p24 = scmp.ge.s32.totalorder %s23, 2
      %s25 = scalar_select %p24, 0, %s23
      %s26 = sadd.s32 1, %s17
      %s27 = scalar_select %p24, %s26, %s17
      %p28 = scmp.ge.s32.totalorder %s27, 1
      %s29 = scalar_select %p28, 0, %s27
      %s30 = ssub.s32 %s17, %s29
      %p31 = scmp.eq.s32.totalorder %s30, 0
      %s33 = sadd.s32 %s32, 1
      %s34 = scalar_select %p31, %s32, %s33
      %p37 = pneg %p31
      %p38 = scmp.eq.s32.totalorder %s10, 1
      %p39 = por %p37, %p38
      %p40 = scmp.ne.s32.totalorder %s32, %s35
      %p41 = scmp.eq.s32.totalorder %s10, 0
      %p42 = por %p40, %p41
      %p43 = scmp.ne.s32.totalorder %s32, %s35
      %p44 = scmp.eq.s32.totalorder %s15, 1
      %p45 = por %p43, %p44
      %p46 = scmp.ne.s32.totalorder %s35, %s36
      %p47 = scmp.eq.s32.totalorder %s15, 0
      %p48 = por %p46, %p47
      %p49 = scmp.ne.s32.totalorder %s35, %s36
      %p50 = scmp.eq.s32.totalorder %s16, 1
      %p51 = por %p49, %p50
      %p53 = scmp.ne.s32.totalorder %s36, %s52
      %p54 = scmp.eq.s32.totalorder %s16, 0
      %p55 = por %p53, %p54
      %s56 = ssub.s32 %s18, %s25
      %p57 = scmp.eq.s32.totalorder %s56, 0
      %s59 = sadd.s32 %s58, 1
      %s60 = scalar_select %p57, %s58, %s59
      %p63 = pneg %p57
      %p64 = scmp.eq.s32.totalorder %s10, 1
      %p65 = por %p63, %p64
      %p66 = scmp.ne.s32.totalorder %s58, %s61
      %p67 = scmp.eq.s32.totalorder %s10, 0
      %p68 = por %p66, %p67
      %p69 = scmp.ne.s32.totalorder %s58, %s61
      %p70 = scmp.eq.s32.totalorder %s15, 1
      %p71 = por %p69, %p70
      %p72 = scmp.ne.s32.totalorder %s61, %s62
      %p73 = scmp.eq.s32.totalorder %s15, 0
      %p74 = por %p72, %p73
      %p75 = scmp.ne.s32.totalorder %s61, %s62
      %p76 = scmp.eq.s32.totalorder %s16, 1
      %p77 = por %p75, %p76
      %p79 = scmp.ne.s32.totalorder %s62, %s78
      %p80 = scmp.eq.s32.totalorder %s16, 0
      %p81 = por %p79, %p80
      %s82 = ssub.s32 %s17, %s29
      %s83 = ssub.s32 %s18, %s25
      %s84 = sor.u32 %s82, %s83
      %p85 = scmp.eq.s32.totalorder %s84, 0
      %s87 = sadd.s32 %s86, 1
      %s88 = scalar_select %p85, %s86, %s87
      %p91 = pneg %p85
      %p92 = scmp.eq.s32.totalorder %s10, 1
      %p93 = por %p91, %p92
      %p94 = scmp.ne.s32.totalorder %s86, %s89
      %p95 = scmp.eq.s32.totalorder %s10, 0
      %p96 = por %p94, %p95
      %p97 = scmp.ne.s32.totalorder %s86, %s89
      %p98 = scmp.eq.s32.totalorder %s15, 1
      %p99 = por %p97, %p98
      %p100 = scmp.ne.s32.totalorder %s89, %s90
      %p101 = scmp.eq.s32.totalorder %s15, 0
      %p102 = por %p100, %p101
      %p103 = scmp.ne.s32.totalorder %s89, %s90
      %p104 = scmp.eq.s32.totalorder %s16, 1
      %p105 = por %p103, %p104
      %p107 = scmp.ne.s32.totalorder %s90, %s106
      %p108 = scmp.eq.s32.totalorder %s16, 0
      %p109 = por %p107, %p108
      %s110 = ssub.s32 %s17, %s29
      %s111 = ssub.s32 %s18, %s25
      %s112 = sor.u32 %s110, %s111
      %p113 = scmp.eq.s32.totalorder %s112, 0
      %s115 = sadd.s32 %s114, 1
      %s116 = scalar_select %p113, %s114, %s115
      %p119 = pneg %p113
      %p120 = scmp.eq.s32.totalorder %s10, 1
      %p121 = por %p119, %p120
      %p122 = scmp.ne.s32.totalorder %s114, %s117
      %p123 = scmp.eq.s32.totalorder %s10, 0
      %p124 = por %p122, %p123
      %p125 = scmp.ne.s32.totalorder %s114, %s117
      %p126 = scmp.eq.s32.totalorder %s15, 1
      %p127 = por %p125, %p126
      %p128 = scmp.ne.s32.totalorder %s117, %s118
      %p129 = scmp.eq.s32.totalorder %s15, 0
      %p130 = por %p128, %p129
      %p131 = scmp.ne.s32.totalorder %s117, %s118
      %p132 = scmp.eq.s32.totalorder %s16, 1
      %p133 = por %p131, %p132
      %p135 = scmp.ne.s32.totalorder %s118, %s134
      %p136 = scmp.eq.s32.totalorder %s16, 0
      %p137 = por %p135, %p136
      %p138 = scmp.le.s32.totalorder 1, %s10
      %p139 = scmp.lt.s32.totalorder %s10, 3
      %p140 = pnand %p138, %p139
      %p141 = pneg %p140
      // Predicated region
      $region9: #{basic_block_forward.2} parent=5 // pred_check
        _
      $region10: #{basic_block_forward.2} parent=5 // pred_check_branch
        %143 = sbr.rel (%p140) target = $region12
      $region11: #{basic_block_forward.2} parent=5 // pred_region
        %s144 = ssub.s32 %s10, 1
        // Predicated region
        $region13: #{basic_block_forward.2} parent=11 // pred_check
          %p145 = pneg %p48
        $region14: #{basic_block_forward.2} parent=11 // pred_check_branch
          %147 = sbr.rel (%p145) target = $region16
        $region15: #{basic_block_forward.2} parent=11 // pred_region
          %s148 = smul.u32 16, %s19
          %p149 = scmp.lt.s32.totalorder %s148, 15
          %s150 = scalar_select %p149, %s148, 15
          %s151 = smul.addr %s150, 9
          %s152 = smul.addr %s151, 8
          %s153 = scalar_lea.vmem %s0, %s152
          %s154 = smul.u32 16, %s19
        $region16: #{basic_block_forward.2} parent=11 // pred_fallthru
          _
      $region12: #{basic_block_forward.2} parent=5 // pred_fallthru
        _
      %p155 = scmp.lt.s32.totalorder %s10, 2
      // Predicated region
      $region17: #{basic_block_forward.2} parent=5 // pred_check
        %p156 = pneg %p155
      $region18: #{basic_block_forward.2} parent=5 // pred_check_branch
        %158 = sbr.rel (%p156) target = $region20
      $region19: #{basic_block_forward.2} parent=5 // pred_region
        // Predicated region
        $region21: #{basic_block_forward.2} parent=19 // pred_check
          %p159 = pneg %p68
        $region22: #{basic_block_forward.2} parent=19 // pred_check_branch
          %161 = sbr.rel (%p159) target = $region24
        $region23: #{basic_block_forward.2} parent=19 // pred_region
          %s162 = sand.u32 %s58, 1
          %s163 = sand.u32 %s58, 1
          %s164 = smul.addr %s163, 1152
          %s165 = scalar_lea.vmem [#allocation2], %s164
          %s166 = smul.addr %s18, 8
          %s167 = scalar_lea.vmem %s1, %s166
          // Predicated region
          $region25: #{basic_block_forward.2} parent=23 // pred_check
            _
          $region26: #{basic_block_forward.2} parent=23 // pred_check_branch
            %169 = sbr.rel (0) target = $region28
          $region27: #{basic_block_forward.2} parent=23 // pred_region
            // Predicated region
            $region29: #{basic_block_forward.2} parent=27 // pred_check
              _
            $region30: #{basic_block_forward.2} parent=27 // pred_check_branch
              %171 = sbr.rel (0) target = $region32
            $region31: #{basic_block_forward.2} parent=27 // pred_region
              // Predicated region
              $region44: #{basic_block_forward.2} parent=31 // pred_check
                _
              $region45: #{basic_block_forward.2} parent=31 // pred_check_branch
                %473 = sbr.rel (0) target = $region47
              $region46: #{basic_block_forward.2} parent=31 // pred_region
                loop: start=0, step=1, limit=1
                $region48: #{basic_block_forward.2} parent=46 // loop_pre_header
                  _
                $region49: #{basic_block_forward.2} parent=46 // loop_header
                  %s475 = sphi 0, %s479
                  %p476 = scmp.ge.s32.totalorder %s475, 1
                  %s480 = sphi %s167, %s167
                  %s481 = sphi %s165, %s165
                $region50: #{basic_block_forward.2} parent=46 // loop_header_branch
                  %478 = sbr.rel (%p476) target = $region54
                $region51: #{basic_block_forward.2} parent=46 // loop_body
                  %v482 = vld [vmem:[%s480] sm:$0xff]
                  %483 = vst [vmem:[%s481] sm:$0xff] %v482
                  %v484 = vld [vmem:[%s480 + $0x10] sm:$0xff]
                  %485 = vst [vmem:[%s481 + $0x8] sm:$0xff] %v484
                  %v486 = vld [vmem:[%s480 + $0x20] sm:$0xff]
                  %487 = vst [vmem:[%s481 + $0x10] sm:$0xff] %v486
                  %v488 = vld [vmem:[%s480 + $0x30] sm:$0xff]
                  %489 = vst [vmem:[%s481 + $0x18] sm:$0xff] %v488
                  %v490 = vld [vmem:[%s480 + $0x40] sm:$0xff]
                  %491 = vst [vmem:[%s481 + $0x20] sm:$0xff] %v490
                  %v492 = vld [vmem:[%s480 + $0x50] sm:$0xff]
                  %493 = vst [vmem:[%s481 + $0x28] sm:$0xff] %v492
                  %v494 = vld [vmem:[%s480 + $0x60] sm:$0xff]
                  %495 = vst [vmem:[%s481 + $0x30] sm:$0xff] %v494
                  %v496 = vld [vmem:[%s480 + $0x70] sm:$0xff]
                  %497 = vst [vmem:[%s481 + $0x38] sm:$0xff] %v496
                  %v498 = vld [vmem:[%s480 + $0x80] sm:$0xff]
                  %499 = vst [vmem:[%s481 + $0x40] sm:$0xff] %v498
                  %v500 = vld [vmem:[%s480 + $0x90] sm:$0xff]
                  %501 = vst [vmem:[%s481 + $0x48] sm:$0xff] %v500
                  %v502 = vld [vmem:[%s480 + $0xa0] sm:$0xff]
                  %503 = vst [vmem:[%s481 + $0x50] sm:$0xff] %v502
                  %v504 = vld [vmem:[%s480 + $0xb0] sm:$0xff]
                  %505 = vst [vmem:[%s481 + $0x58] sm:$0xff] %v504
                  %v506 = vld [vmem:[%s480 + $0xc0] sm:$0xff]
                  %507 = vst [vmem:[%s481 + $0x60] sm:$0xff] %v506
                  %v508 = vld [vmem:[%s480 + $0xd0] sm:$0xff]
                  %509 = vst [vmem:[%s481 + $0x68] sm:$0xff] %v508
                  %v510 = vld [vmem:[%s480 + $0xe0] sm:$0xff]
                  %511 = vst [vmem:[%s481 + $0x70] sm:$0xff] %v510
                  %v512 = vld [vmem:[%s480 + $0xf0] sm:$0xff]
                  %513 = vst [vmem:[%s481 + $0x78] sm:$0xff] %v512
                  %v514 = vld [vmem:[%s480 + $0x100] sm:$0xff]
                  %515 = vst [vmem:[%s481 + $0x80] sm:$0xff] %v514
                  %v516 = vld [vmem:[%s480 + $0x110] sm:$0xff]
                  %517 = vst [vmem:[%s481 + $0x88] sm:$0xff] %v516
                  %v518 = vld [vmem:[%s480 + $0x120] sm:$0xff]
                  %519 = vst [vmem:[%s481 + $0x90] sm:$0xff] %v518
                  %v520 = vld [vmem:[%s480 + $0x130] sm:$0xff]
                  %521 = vst [vmem:[%s481 + $0x98] sm:$0xff] %v520
                  %v522 = vld [vmem:[%s480 + $0x140] sm:$0xff]
                  %523 = vst [vmem:[%s481 + $0xa0] sm:$0xff] %v522
                  %v524 = vld [vmem:[%s480 + $0x150] sm:$0xff]
                  %525 = vst [vmem:[%s481 + $0xa8] sm:$0xff] %v524
                  %v526 = vld [vmem:[%s480 + $0x160] sm:$0xff]
                  %527 = vst [vmem:[%s481 + $0xb0] sm:$0xff] %v526
                  %v528 = vld [vmem:[%s480 + $0x170] sm:$0xff]
                  %529 = vst [vmem:[%s481 + $0xb8] sm:$0xff] %v528
                  %v530 = vld [vmem:[%s480 + $0x180] sm:$0xff]
                  %531 = vst [vmem:[%s481 + $0xc0] sm:$0xff] %v530
                  %v532 = vld [vmem:[%s480 + $0x190] sm:$0xff]
                  %533 = vst [vmem:[%s481 + $0xc8] sm:$0xff] %v532
                  %v534 = vld [vmem:[%s480 + $0x1a0] sm:$0xff]
                  %535 = vst [vmem:[%s481 + $0xd0] sm:$0xff] %v534
                  %v536 = vld [vmem:[%s480 + $0x1b0] sm:$0xff]
                  %537 = vst [vmem:[%s481 + $0xd8] sm:$0xff] %v536
                  %v538 = vld [vmem:[%s480 + $0x1c0] sm:$0xff]
                  %539 = vst [vmem:[%s481 + $0xe0] sm:$0xff] %v538
                  %v540 = vld [vmem:[%s480 + $0x1d0] sm:$0xff]
                  %541 = vst [vmem:[%s481 + $0xe8] sm:$0xff] %v540
                  %v542 = vld [vmem:[%s480 + $0x1e0] sm:$0xff]
                  %543 = vst [vmem:[%s481 + $0xf0] sm:$0xff] %v542
                  %v544 = vld [vmem:[%s480 + $0x1f0] sm:$0xff]
                  %545 = vst [vmem:[%s481 + $0xf8] sm:$0xff] %v544
                  %v546 = vld [vmem:[%s480 + $0x200] sm:$0xff]
                  %547 = vst [vmem:[%s481 + $0x100] sm:$0xff] %v546
                  %v548 = vld [vmem:[%s480 + $0x210] sm:$0xff]
                  %549 = vst [vmem:[%s481 + $0x108] sm:$0xff] %v548
                  %v550 = vld [vmem:[%s480 + $0x220] sm:$0xff]
                  %551 = vst [vmem:[%s481 + $0x110] sm:$0xff] %v550
                  %v552 = vld [vmem:[%s480 + $0x230] sm:$0xff]
                  %553 = vst [vmem:[%s481 + $0x118] sm:$0xff] %v552
                  %v554 = vld [vmem:[%s480 + $0x240] sm:$0xff]
                  %555 = vst [vmem:[%s481 + $0x120] sm:$0xff] %v554
                  %v556 = vld [vmem:[%s480 + $0x250] sm:$0xff]
                  %557 = vst [vmem:[%s481 + $0x128] sm:$0xff] %v556
                  %v558 = vld [vmem:[%s480 + $0x260] sm:$0xff]
                  %559 = vst [vmem:[%s481 + $0x130] sm:$0xff] %v558
                  %v560 = vld [vmem:[%s480 + $0x270] sm:$0xff]
                  %561 = vst [vmem:[%s481 + $0x138] sm:$0xff] %v560
                  %v562 = vld [vmem:[%s480 + $0x280] sm:$0xff]
                  %563 = vst [vmem:[%s481 + $0x140] sm:$0xff] %v562
                  %v564 = vld [vmem:[%s480 + $0x290] sm:$0xff]
                  %565 = vst [vmem:[%s481 + $0x148] sm:$0xff] %v564
                  %v566 = vld [vmem:[%s480 + $0x2a0] sm:$0xff]
                  %567 = vst [vmem:[%s481 + $0x150] sm:$0xff] %v566
                  %v568 = vld [vmem:[%s480 + $0x2b0] sm:$0xff]
                  %569 = vst [vmem:[%s481 + $0x158] sm:$0xff] %v568
                  %v570 = vld [vmem:[%s480 + $0x2c0] sm:$0xff]
                  %571 = vst [vmem:[%s481 + $0x160] sm:$0xff] %v570
                  %v572 = vld [vmem:[%s480 + $0x2d0] sm:$0xff]
                  %573 = vst [vmem:[%s481 + $0x168] sm:$0xff] %v572
                  %v574 = vld [vmem:[%s480 + $0x2e0] sm:$0xff]
                  %575 = vst [vmem:[%s481 + $0x170] sm:$0xff] %v574
                  %v576 = vld [vmem:[%s480 + $0x2f0] sm:$0xff]
                  %577 = vst [vmem:[%s481 + $0x178] sm:$0xff] %v576
                  %v578 = vld [vmem:[%s480 + $0x300] sm:$0xff]
                  %579 = vst [vmem:[%s481 + $0x180] sm:$0xff] %v578
                  %v580 = vld [vmem:[%s480 + $0x310] sm:$0xff]
                  %581 = vst [vmem:[%s481 + $0x188] sm:$0xff] %v580
                  %v582 = vld [vmem:[%s480 + $0x320] sm:$0xff]
                  %583 = vst [vmem:[%s481 + $0x190] sm:$0xff] %v582
                  %v584 = vld [vmem:[%s480 + $0x330] sm:$0xff]
                  %585 = vst [vmem:[%s481 + $0x198] sm:$0xff] %v584
                  %v586 = vld [vmem:[%s480 + $0x340] sm:$0xff]
                  %587 = vst [vmem:[%s481 + $0x1a0] sm:$0xff] %v586
                  %v588 = vld [vmem:[%s480 + $0x350] sm:$0xff]
                  %589 = vst [vmem:[%s481 + $0x1a8] sm:$0xff] %v588
                  %v590 = vld [vmem:[%s480 + $0x360] sm:$0xff]
                  %591 = vst [vmem:[%s481 + $0x1b0] sm:$0xff] %v590
                  %v592 = vld [vmem:[%s480 + $0x370] sm:$0xff]
                  %593 = vst [vmem:[%s481 + $0x1b8] sm:$0xff] %v592
                  %v594 = vld [vmem:[%s480 + $0x380] sm:$0xff]
                  %595 = vst [vmem:[%s481 + $0x1c0] sm:$0xff] %v594
                  %v596 = vld [vmem:[%s480 + $0x390] sm:$0xff]
                  %597 = vst [vmem:[%s481 + $0x1c8] sm:$0xff] %v596
                  %v598 = vld [vmem:[%s480 + $0x3a0] sm:$0xff]
                  %599 = vst [vmem:[%s481 + $0x1d0] sm:$0xff] %v598
                  %v600 = vld [vmem:[%s480 + $0x3b0] sm:$0xff]
                  %601 = vst [vmem:[%s481 + $0x1d8] sm:$0xff] %v600
                  %v602 = vld [vmem:[%s480 + $0x3c0] sm:$0xff]
                  %603 = vst [vmem:[%s481 + $0x1e0] sm:$0xff] %v602
                  %v604 = vld [vmem:[%s480 + $0x3d0] sm:$0xff]
                  %605 = vst [vmem:[%s481 + $0x1e8] sm:$0xff] %v604
                  %v606 = vld [vmem:[%s480 + $0x3e0] sm:$0xff]
                  %607 = vst [vmem:[%s481 + $0x1f0] sm:$0xff] %v606
                  %v608 = vld [vmem:[%s480 + $0x3f0] sm:$0xff]
                  %609 = vst [vmem:[%s481 + $0x1f8] sm:$0xff] %v608
                  %v610 = vld [vmem:[%s480 + $0x400] sm:$0xff]
                  %611 = vst [vmem:[%s481 + $0x200] sm:$0xff] %v610
                  %v612 = vld [vmem:[%s480 + $0x410] sm:$0xff]
                  %613 = vst [vmem:[%s481 + $0x208] sm:$0xff] %v612
                  %v614 = vld [vmem:[%s480 + $0x420] sm:$0xff]
                  %615 = vst [vmem:[%s481 + $0x210] sm:$0xff] %v614
                  %v616 = vld [vmem:[%s480 + $0x430] sm:$0xff]
                  %617 = vst [vmem:[%s481 + $0x218] sm:$0xff] %v616
                  %v618 = vld [vmem:[%s480 + $0x440] sm:$0xff]
                  %619 = vst [vmem:[%s481 + $0x220] sm:$0xff] %v618
                  %v620 = vld [vmem:[%s480 + $0x450] sm:$0xff]
                  %621 = vst [vmem:[%s481 + $0x228] sm:$0xff] %v620
                  %v622 = vld [vmem:[%s480 + $0x460] sm:$0xff]
                  %623 = vst [vmem:[%s481 + $0x230] sm:$0xff] %v622
                  %v624 = vld [vmem:[%s480 + $0x470] sm:$0xff]
                  %625 = vst [vmem:[%s481 + $0x238] sm:$0xff] %v624
                  %v626 = vld [vmem:[%s480 + $0x480] sm:$0xff]
                  %627 = vst [vmem:[%s481 + $0x240] sm:$0xff] %v626
                  %v628 = vld [vmem:[%s480 + $0x490] sm:$0xff]
                  %629 = vst [vmem:[%s481 + $0x248] sm:$0xff] %v628
                  %v630 = vld [vmem:[%s480 + $0x4a0] sm:$0xff]
                  %631 = vst [vmem:[%s481 + $0x250] sm:$0xff] %v630
                  %v632 = vld [vmem:[%s480 + $0x4b0] sm:$0xff]
                  %633 = vst [vmem:[%s481 + $0x258] sm:$0xff] %v632
                  %v634 = vld [vmem:[%s480 + $0x4c0] sm:$0xff]
                  %635 = vst [vmem:[%s481 + $0x260] sm:$0xff] %v634
                  %v636 = vld [vmem:[%s480 + $0x4d0] sm:$0xff]
                  %637 = vst [vmem:[%s481 + $0x268] sm:$0xff] %v636
                  %v638 = vld [vmem:[%s480 + $0x4e0] sm:$0xff]
                  %639 = vst [vmem:[%s481 + $0x270] sm:$0xff] %v638
                  %v640 = vld [vmem:[%s480 + $0x4f0] sm:$0xff]
                  %641 = vst [vmem:[%s481 + $0x278] sm:$0xff] %v640
                  %v642 = vld [vmem:[%s480 + $0x500] sm:$0xff]
                  %643 = vst [vmem:[%s481 + $0x280] sm:$0xff] %v642
                  %v644 = vld [vmem:[%s480 + $0x510] sm:$0xff]
                  %645 = vst [vmem:[%s481 + $0x288] sm:$0xff] %v644
                  %v646 = vld [vmem:[%s480 + $0x520] sm:$0xff]
                  %647 = vst [vmem:[%s481 + $0x290] sm:$0xff] %v646
                  %v648 = vld [vmem:[%s480 + $0x530] sm:$0xff]
                  %649 = vst [vmem:[%s481 + $0x298] sm:$0xff] %v648
                  %v650 = vld [vmem:[%s480 + $0x540] sm:$0xff]
                  %651 = vst [vmem:[%s481 + $0x2a0] sm:$0xff] %v650
                  %v652 = vld [vmem:[%s480 + $0x550] sm:$0xff]
                  %653 = vst [vmem:[%s481 + $0x2a8] sm:$0xff] %v652
                  %v654 = vld [vmem:[%s480 + $0x560] sm:$0xff]
                  %655 = vst [vmem:[%s481 + $0x2b0] sm:$0xff] %v654
                  %v656 = vld [vmem:[%s480 + $0x570] sm:$0xff]
                  %657 = vst [vmem:[%s481 + $0x2b8] sm:$0xff] %v656
                  %v658 = vld [vmem:[%s480 + $0x580] sm:$0xff]
                  %659 = vst [vmem:[%s481 + $0x2c0] sm:$0xff] %v658
                  %v660 = vld [vmem:[%s480 + $0x590] sm:$0xff]
                  %661 = vst [vmem:[%s481 + $0x2c8] sm:$0xff] %v660
                  %v662 = vld [vmem:[%s480 + $0x5a0] sm:$0xff]
                  %663 = vst [vmem:[%s481 + $0x2d0] sm:$0xff] %v662
                  %v664 = vld [vmem:[%s480 + $0x5b0] sm:$0xff]
                  %665 = vst [vmem:[%s481 + $0x2d8] sm:$0xff] %v664
                  %v666 = vld [vmem:[%s480 + $0x5c0] sm:$0xff]
                  %667 = vst [vmem:[%s481 + $0x2e0] sm:$0xff] %v666
                  %v668 = vld [vmem:[%s480 + $0x5d0] sm:$0xff]
                  %669 = vst [vmem:[%s481 + $0x2e8] sm:$0xff] %v668
                  %v670 = vld [vmem:[%s480 + $0x5e0] sm:$0xff]
                  %671 = vst [vmem:[%s481 + $0x2f0] sm:$0xff] %v670
                  %v672 = vld [vmem:[%s480 + $0x5f0] sm:$0xff]
                  %673 = vst [vmem:[%s481 + $0x2f8] sm:$0xff] %v672
                  %v674 = vld [vmem:[%s480 + $0x600] sm:$0xff]
                  %675 = vst [vmem:[%s481 + $0x300] sm:$0xff] %v674
                  %v676 = vld [vmem:[%s480 + $0x610] sm:$0xff]
                  %677 = vst [vmem:[%s481 + $0x308] sm:$0xff] %v676
                  %v678 = vld [vmem:[%s480 + $0x620] sm:$0xff]
                  %679 = vst [vmem:[%s481 + $0x310] sm:$0xff] %v678
                  %v680 = vld [vmem:[%s480 + $0x630] sm:$0xff]
                  %681 = vst [vmem:[%s481 + $0x318] sm:$0xff] %v680
                  %v682 = vld [vmem:[%s480 + $0x640] sm:$0xff]
                  %683 = vst [vmem:[%s481 + $0x320] sm:$0xff] %v682
                  %v684 = vld [vmem:[%s480 + $0x650] sm:$0xff]
                  %685 = vst [vmem:[%s481 + $0x328] sm:$0xff] %v684
                  %v686 = vld [vmem:[%s480 + $0x660] sm:$0xff]
                  %687 = vst [vmem:[%s481 + $0x330] sm:$0xff] %v686
                  %v688 = vld [vmem:[%s480 + $0x670] sm:$0xff]
                  %689 = vst [vmem:[%s481 + $0x338] sm:$0xff] %v688
                  %v690 = vld [vmem:[%s480 + $0x680] sm:$0xff]
                  %691 = vst [vmem:[%s481 + $0x340] sm:$0xff] %v690
                  %v692 = vld [vmem:[%s480 + $0x690] sm:$0xff]
                  %693 = vst [vmem:[%s481 + $0x348] sm:$0xff] %v692
                  %v694 = vld [vmem:[%s480 + $0x6a0] sm:$0xff]
                  %695 = vst [vmem:[%s481 + $0x350] sm:$0xff] %v694
                  %v696 = vld [vmem:[%s480 + $0x6b0] sm:$0xff]
                  %697 = vst [vmem:[%s481 + $0x358] sm:$0xff] %v696
                  %v698 = vld [vmem:[%s480 + $0x6c0] sm:$0xff]
                  %699 = vst [vmem:[%s481 + $0x360] sm:$0xff] %v698
                  %v700 = vld [vmem:[%s480 + $0x6d0] sm:$0xff]
                  %701 = vst [vmem:[%s481 + $0x368] sm:$0xff] %v700
                  %v702 = vld [vmem:[%s480 + $0x6e0] sm:$0xff]
                  %703 = vst [vmem:[%s481 + $0x370] sm:$0xff] %v702
                  %v704 = vld [vmem:[%s480 + $0x6f0] sm:$0xff]
                  %705 = vst [vmem:[%s481 + $0x378] sm:$0xff] %v704
                  %v706 = vld [vmem:[%s480 + $0x700] sm:$0xff]
                  %707 = vst [vmem:[%s481 + $0x380] sm:$0xff] %v706
                  %v708 = vld [vmem:[%s480 + $0x710] sm:$0xff]
                  %709 = vst [vmem:[%s481 + $0x388] sm:$0xff] %v708
                  %v710 = vld [vmem:[%s480 + $0x720] sm:$0xff]
                  %711 = vst [vmem:[%s481 + $0x390] sm:$0xff] %v710
                  %v712 = vld [vmem:[%s480 + $0x730] sm:$0xff]
                  %713 = vst [vmem:[%s481 + $0x398] sm:$0xff] %v712
                  %v714 = vld [vmem:[%s480 + $0x740] sm:$0xff]
                  %715 = vst [vmem:[%s481 + $0x3a0] sm:$0xff] %v714
                  %v716 = vld [vmem:[%s480 + $0x750] sm:$0xff]
                  %717 = vst [vmem:[%s481 + $0x3a8] sm:$0xff] %v716
                  %v718 = vld [vmem:[%s480 + $0x760] sm:$0xff]
                  %719 = vst [vmem:[%s481 + $0x3b0] sm:$0xff] %v718
                  %v720 = vld [vmem:[%s480 + $0x770] sm:$0xff]
                  %721 = vst [vmem:[%s481 + $0x3b8] sm:$0xff] %v720
                  %v722 = vld [vmem:[%s480 + $0x780] sm:$0xff]
                  %723 = vst [vmem:[%s481 + $0x3c0] sm:$0xff] %v722
                  %v724 = vld [vmem:[%s480 + $0x790] sm:$0xff]
                  %725 = vst [vmem:[%s481 + $0x3c8] sm:$0xff] %v724
                  %v726 = vld [vmem:[%s480 + $0x7a0] sm:$0xff]
                  %727 = vst [vmem:[%s481 + $0x3d0] sm:$0xff] %v726
                  %v728 = vld [vmem:[%s480 + $0x7b0] sm:$0xff]
                  %729 = vst [vmem:[%s481 + $0x3d8] sm:$0xff] %v728
                  %v730 = vld [vmem:[%s480 + $0x7c0] sm:$0xff]
                  %731 = vst [vmem:[%s481 + $0x3e0] sm:$0xff] %v730
                  %v732 = vld [vmem:[%s480 + $0x7d0] sm:$0xff]
                  %733 = vst [vmem:[%s481 + $0x3e8] sm:$0xff] %v732
                  %v734 = vld [vmem:[%s480 + $0x7e0] sm:$0xff]
                  %735 = vst [vmem:[%s481 + $0x3f0] sm:$0xff] %v734
                  %v736 = vld [vmem:[%s480 + $0x7f0] sm:$0xff]
                  %737 = vst [vmem:[%s481 + $0x3f8] sm:$0xff] %v736
                  %v738 = vld [vmem:[%s480 + $0x800] sm:$0xff]
                  %739 = vst [vmem:[%s481 + $0x400] sm:$0xff] %v738
                  %v740 = vld [vmem:[%s480 + $0x810] sm:$0xff]
                  %741 = vst [vmem:[%s481 + $0x408] sm:$0xff] %v740
                  %v742 = vld [vmem:[%s480 + $0x820] sm:$0xff]
                  %743 = vst [vmem:[%s481 + $0x410] sm:$0xff] %v742
                  %v744 = vld [vmem:[%s480 + $0x830] sm:$0xff]
                  %745 = vst [vmem:[%s481 + $0x418] sm:$0xff] %v744
                  %v746 = vld [vmem:[%s480 + $0x840] sm:$0xff]
                  %747 = vst [vmem:[%s481 + $0x420] sm:$0xff] %v746
                  %v748 = vld [vmem:[%s480 + $0x850] sm:$0xff]
                  %749 = vst [vmem:[%s481 + $0x428] sm:$0xff] %v748
                  %v750 = vld [vmem:[%s480 + $0x860] sm:$0xff]
                  %751 = vst [vmem:[%s481 + $0x430] sm:$0xff] %v750
                  %v752 = vld [vmem:[%s480 + $0x870] sm:$0xff]
                  %753 = vst [vmem:[%s481 + $0x438] sm:$0xff] %v752
                  %v754 = vld [vmem:[%s480 + $0x880] sm:$0xff]
                  %755 = vst [vmem:[%s481 + $0x440] sm:$0xff] %v754
                  %v756 = vld [vmem:[%s480 + $0x890] sm:$0xff]
                  %757 = vst [vmem:[%s481 + $0x448] sm:$0xff] %v756
                  %v758 = vld [vmem:[%s480 + $0x8a0] sm:$0xff]
                  %759 = vst [vmem:[%s481 + $0x450] sm:$0xff] %v758
                  %v760 = vld [vmem:[%s480 + $0x8b0] sm:$0xff]
                  %761 = vst [vmem:[%s481 + $0x458] sm:$0xff] %v760
                  %v762 = vld [vmem:[%s480 + $0x8c0] sm:$0xff]
                  %763 = vst [vmem:[%s481 + $0x460] sm:$0xff] %v762
                  %v764 = vld [vmem:[%s480 + $0x8d0] sm:$0xff]
                  %765 = vst [vmem:[%s481 + $0x468] sm:$0xff] %v764
                  %v766 = vld [vmem:[%s480 + $0x8e0] sm:$0xff]
                  %767 = vst [vmem:[%s481 + $0x470] sm:$0xff] %v766
                  %v768 = vld [vmem:[%s480 + $0x8f0] sm:$0xff]
                  %769 = vst [vmem:[%s481 + $0x478] sm:$0xff] %v768
                $region52: #{basic_block_forward.2} parent=46 // loop_footer
                  %s479 = sadd.s32 1, %s475
                $region53: #{basic_block_forward.2} parent=46 // loop_footer_branch
                  %474 = sbr.rel target = $region49
                $region54: #{basic_block_forward.2} parent=46 // loop_exit
                  _
              $region47: #{basic_block_forward.2} parent=31 // pred_fallthru
                _
              // Predicated region
              $region55: #{basic_block_forward.2} parent=31 // pred_check
                _
              $region56: #{basic_block_forward.2} parent=31 // pred_check_branch
                %771 = sbr.rel target = $region58
              $region57: #{basic_block_forward.2} parent=31 // pred_region
                _
              $region58: #{basic_block_forward.2} parent=31 // pred_fallthru
                _
            $region32: #{basic_block_forward.2} parent=27 // pred_fallthru
              _
            // Predicated region
            $region33: #{basic_block_forward.2} parent=27 // pred_check
              _
            $region34: #{basic_block_forward.2} parent=27 // pred_check_branch
              %173 = sbr.rel target = $region36
            $region35: #{basic_block_forward.2} parent=27 // pred_region
              %s175 = ssub.s32 256, 1
              loop: start=0, step=1, limit=1
              $region37: #{basic_block_forward.2} parent=35 // loop_pre_header
                _
              $region38: #{basic_block_forward.2} parent=35 // loop_header
                %s177 = sphi 0, %s181
                %p178 = scmp.ge.s32.totalorder %s177, 1
                %s182 = sphi %s167, %s167
                %s183 = sphi %s165, %s165
              $region39: #{basic_block_forward.2} parent=35 // loop_header_branch
                %180 = sbr.rel (%p178) target = $region43
              $region40: #{basic_block_forward.2} parent=35 // loop_body
                %v184 = vld [vmem:[%s182] sm:%s175]
                %185 = vst [vmem:[%s183] sm:%s175] %v184
                %v186 = vld [vmem:[%s182 + $0x10] sm:%s175]
                %187 = vst [vmem:[%s183 + $0x8] sm:%s175] %v186
                %v188 = vld [vmem:[%s182 + $0x20] sm:%s175]
                %189 = vst [vmem:[%s183 + $0x10] sm:%s175] %v188
                %v190 = vld [vmem:[%s182 + $0x30] sm:%s175]
                %191 = vst [vmem:[%s183 + $0x18] sm:%s175] %v190
                %v192 = vld [vmem:[%s182 + $0x40] sm:%s175]
                %193 = vst [vmem:[%s183 + $0x20] sm:%s175] %v192
                %v194 = vld [vmem:[%s182 + $0x50] sm:%s175]
                %195 = vst [vmem:[%s183 + $0x28] sm:%s175] %v194
                %v196 = vld [vmem:[%s182 + $0x60] sm:%s175]
                %197 = vst [vmem:[%s183 + $0x30] sm:%s175] %v196
                %v198 = vld [vmem:[%s182 + $0x70] sm:%s175]
                %199 = vst [vmem:[%s183 + $0x38] sm:%s175] %v198
                %v200 = vld [vmem:[%s182 + $0x80] sm:%s175]
                %201 = vst [vmem:[%s183 + $0x40] sm:%s175] %v200
                %v202 = vld [vmem:[%s182 + $0x90] sm:%s175]
                %203 = vst [vmem:[%s183 + $0x48] sm:%s175] %v202
                %v204 = vld [vmem:[%s182 + $0xa0] sm:%s175]
                %205 = vst [vmem:[%s183 + $0x50] sm:%s175] %v204
                %v206 = vld [vmem:[%s182 + $0xb0] sm:%s175]
                %207 = vst [vmem:[%s183 + $0x58] sm:%s175] %v206
                %v208 = vld [vmem:[%s182 + $0xc0] sm:%s175]
                %209 = vst [vmem:[%s183 + $0x60] sm:%s175] %v208
                %v210 = vld [vmem:[%s182 + $0xd0] sm:%s175]
                %211 = vst [vmem:[%s183 + $0x68] sm:%s175] %v210
                %v212 = vld [vmem:[%s182 + $0xe0] sm:%s175]
                %213 = vst [vmem:[%s183 + $0x70] sm:%s175] %v212
                %v214 = vld [vmem:[%s182 + $0xf0] sm:%s175]
                %215 = vst [vmem:[%s183 + $0x78] sm:%s175] %v214
                %v216 = vld [vmem:[%s182 + $0x100] sm:%s175]
                %217 = vst [vmem:[%s183 + $0x80] sm:%s175] %v216
                %v218 = vld [vmem:[%s182 + $0x110] sm:%s175]
                %219 = vst [vmem:[%s183 + $0x88] sm:%s175] %v218
                %v220 = vld [vmem:[%s182 + $0x120] sm:%s175]
                %221 = vst [vmem:[%s183 + $0x90] sm:%s175] %v220
                %v222 = vld [vmem:[%s182 + $0x130] sm:%s175]
                %223 = vst [vmem:[%s183 + $0x98] sm:%s175] %v222
                %v224 = vld [vmem:[%s182 + $0x140] sm:%s175]
                %225 = vst [vmem:[%s183 + $0xa0] sm:%s175] %v224
                %v226 = vld [vmem:[%s182 + $0x150] sm:%s175]
                %227 = vst [vmem:[%s183 + $0xa8] sm:%s175] %v226
                %v228 = vld [vmem:[%s182 + $0x160] sm:%s175]
                %229 = vst [vmem:[%s183 + $0xb0] sm:%s175] %v228
                %v230 = vld [vmem:[%s182 + $0x170] sm:%s175]
                %231 = vst [vmem:[%s183 + $0xb8] sm:%s175] %v230
                %v232 = vld [vmem:[%s182 + $0x180] sm:%s175]
                %233 = vst [vmem:[%s183 + $0xc0] sm:%s175] %v232
                %v234 = vld [vmem:[%s182 + $0x190] sm:%s175]
                %235 = vst [vmem:[%s183 + $0xc8] sm:%s175] %v234
                %v236 = vld [vmem:[%s182 + $0x1a0] sm:%s175]
                %237 = vst [vmem:[%s183 + $0xd0] sm:%s175] %v236
                %v238 = vld [vmem:[%s182 + $0x1b0] sm:%s175]
                %239 = vst [vmem:[%s183 + $0xd8] sm:%s175] %v238
                %v240 = vld [vmem:[%s182 + $0x1c0] sm:%s175]
                %241 = vst [vmem:[%s183 + $0xe0] sm:%s175] %v240
                %v242 = vld [vmem:[%s182 + $0x1d0] sm:%s175]
                %243 = vst [vmem:[%s183 + $0xe8] sm:%s175] %v242
                %v244 = vld [vmem:[%s182 + $0x1e0] sm:%s175]
                %245 = vst [vmem:[%s183 + $0xf0] sm:%s175] %v244
                %v246 = vld [vmem:[%s182 + $0x1f0] sm:%s175]
                %247 = vst [vmem:[%s183 + $0xf8] sm:%s175] %v246
                %v248 = vld [vmem:[%s182 + $0x200] sm:%s175]
                %249 = vst [vmem:[%s183 + $0x100] sm:%s175] %v248
                %v250 = vld [vmem:[%s182 + $0x210] sm:%s175]
                %251 = vst [vmem:[%s183 + $0x108] sm:%s175] %v250
                %v252 = vld [vmem:[%s182 + $0x220] sm:%s175]
                %253 = vst [vmem:[%s183 + $0x110] sm:%s175] %v252
                %v254 = vld [vmem:[%s182 + $0x230] sm:%s175]
                %255 = vst [vmem:[%s183 + $0x118] sm:%s175] %v254
                %v256 = vld [vmem:[%s182 + $0x240] sm:%s175]
                %257 = vst [vmem:[%s183 + $0x120] sm:%s175] %v256
                %v258 = vld [vmem:[%s182 + $0x250] sm:%s175]
                %259 = vst [vmem:[%s183 + $0x128] sm:%s175] %v258
                %v260 = vld [vmem:[%s182 + $0x260] sm:%s175]
                %261 = vst [vmem:[%s183 + $0x130] sm:%s175] %v260
                %v262 = vld [vmem:[%s182 + $0x270] sm:%s175]
                %263 = vst [vmem:[%s183 + $0x138] sm:%s175] %v262
                %v264 = vld [vmem:[%s182 + $0x280] sm:%s175]
                %265 = vst [vmem:[%s183 + $0x140] sm:%s175] %v264
                %v266 = vld [vmem:[%s182 + $0x290] sm:%s175]
                %267 = vst [vmem:[%s183 + $0x148] sm:%s175] %v266
                %v268 = vld [vmem:[%s182 + $0x2a0] sm:%s175]
                %269 = vst [vmem:[%s183 + $0x150] sm:%s175] %v268
                %v270 = vld [vmem:[%s182 + $0x2b0] sm:%s175]
                %271 = vst [vmem:[%s183 + $0x158] sm:%s175] %v270
                %v272 = vld [vmem:[%s182 + $0x2c0] sm:%s175]
                %273 = vst [vmem:[%s183 + $0x160] sm:%s175] %v272
                %v274 = vld [vmem:[%s182 + $0x2d0] sm:%s175]
                %275 = vst [vmem:[%s183 + $0x168] sm:%s175] %v274
                %v276 = vld [vmem:[%s182 + $0x2e0] sm:%s175]
                %277 = vst [vmem:[%s183 + $0x170] sm:%s175] %v276
                %v278 = vld [vmem:[%s182 + $0x2f0] sm:%s175]
                %279 = vst [vmem:[%s183 + $0x178] sm:%s175] %v278
                %v280 = vld [vmem:[%s182 + $0x300] sm:%s175]
                %281 = vst [vmem:[%s183 + $0x180] sm:%s175] %v280
                %v282 = vld [vmem:[%s182 + $0x310] sm:%s175]
                %283 = vst [vmem:[%s183 + $0x188] sm:%s175] %v282
                %v284 = vld [vmem:[%s182 + $0x320] sm:%s175]
                %285 = vst [vmem:[%s183 + $0x190] sm:%s175] %v284
                %v286 = vld [vmem:[%s182 + $0x330] sm:%s175]
                %287 = vst [vmem:[%s183 + $0x198] sm:%s175] %v286
                %v288 = vld [vmem:[%s182 + $0x340] sm:%s175]
                %289 = vst [vmem:[%s183 + $0x1a0] sm:%s175] %v288
                %v290 = vld [vmem:[%s182 + $0x350] sm:%s175]
                %291 = vst [vmem:[%s183 + $0x1a8] sm:%s175] %v290
                %v292 = vld [vmem:[%s182 + $0x360] sm:%s175]
                %293 = vst [vmem:[%s183 + $0x1b0] sm:%s175] %v292
                %v294 = vld [vmem:[%s182 + $0x370] sm:%s175]
                %295 = vst [vmem:[%s183 + $0x1b8] sm:%s175] %v294
                %v296 = vld [vmem:[%s182 + $0x380] sm:%s175]
                %297 = vst [vmem:[%s183 + $0x1c0] sm:%s175] %v296
                %v298 = vld [vmem:[%s182 + $0x390] sm:%s175]
                %299 = vst [vmem:[%s183 + $0x1c8] sm:%s175] %v298
                %v300 = vld [vmem:[%s182 + $0x3a0] sm:%s175]
                %301 = vst [vmem:[%s183 + $0x1d0] sm:%s175] %v300
                %v302 = vld [vmem:[%s182 + $0x3b0] sm:%s175]
                %303 = vst [vmem:[%s183 + $0x1d8] sm:%s175] %v302
                %v304 = vld [vmem:[%s182 + $0x3c0] sm:%s175]
                %305 = vst [vmem:[%s183 + $0x1e0] sm:%s175] %v304
                %v306 = vld [vmem:[%s182 + $0x3d0] sm:%s175]
                %307 = vst [vmem:[%s183 + $0x1e8] sm:%s175] %v306
                %v308 = vld [vmem:[%s182 + $0x3e0] sm:%s175]
                %309 = vst [vmem:[%s183 + $0x1f0] sm:%s175] %v308
                %v310 = vld [vmem:[%s182 + $0x3f0] sm:%s175]
                %311 = vst [vmem:[%s183 + $0x1f8] sm:%s175] %v310
                %v312 = vld [vmem:[%s182 + $0x400] sm:%s175]
                %313 = vst [vmem:[%s183 + $0x200] sm:%s175] %v312
                %v314 = vld [vmem:[%s182 + $0x410] sm:%s175]
                %315 = vst [vmem:[%s183 + $0x208] sm:%s175] %v314
                %v316 = vld [vmem:[%s182 + $0x420] sm:%s175]
                %317 = vst [vmem:[%s183 + $0x210] sm:%s175] %v316
                %v318 = vld [vmem:[%s182 + $0x430] sm:%s175]
                %319 = vst [vmem:[%s183 + $0x218] sm:%s175] %v318
                %v320 = vld [vmem:[%s182 + $0x440] sm:%s175]
                %321 = vst [vmem:[%s183 + $0x220] sm:%s175] %v320
                %v322 = vld [vmem:[%s182 + $0x450] sm:%s175]
                %323 = vst [vmem:[%s183 + $0x228] sm:%s175] %v322
                %v324 = vld [vmem:[%s182 + $0x460] sm:%s175]
                %325 = vst [vmem:[%s183 + $0x230] sm:%s175] %v324
                %v326 = vld [vmem:[%s182 + $0x470] sm:%s175]
                %327 = vst [vmem:[%s183 + $0x238] sm:%s175] %v326
                %v328 = vld [vmem:[%s182 + $0x480] sm:%s175]
                %329 = vst [vmem:[%s183 + $0x240] sm:%s175] %v328
                %v330 = vld [vmem:[%s182 + $0x490] sm:%s175]
                %331 = vst [vmem:[%s183 + $0x248] sm:%s175] %v330
                %v332 = vld [vmem:[%s182 + $0x4a0] sm:%s175]
                %333 = vst [vmem:[%s183 + $0x250] sm:%s175] %v332
                %v334 = vld [vmem:[%s182 + $0x4b0] sm:%s175]
                %335 = vst [vmem:[%s183 + $0x258] sm:%s175] %v334
                %v336 = vld [vmem:[%s182 + $0x4c0] sm:%s175]
                %337 = vst [vmem:[%s183 + $0x260] sm:%s175] %v336
                %v338 = vld [vmem:[%s182 + $0x4d0] sm:%s175]
                %339 = vst [vmem:[%s183 + $0x268] sm:%s175] %v338
                %v340 = vld [vmem:[%s182 + $0x4e0] sm:%s175]
                %341 = vst [vmem:[%s183 + $0x270] sm:%s175] %v340
                %v342 = vld [vmem:[%s182 + $0x4f0] sm:%s175]
                %343 = vst [vmem:[%s183 + $0x278] sm:%s175] %v342
                %v344 = vld [vmem:[%s182 + $0x500] sm:%s175]
                %345 = vst [vmem:[%s183 + $0x280] sm:%s175] %v344
                %v346 = vld [vmem:[%s182 + $0x510] sm:%s175]
                %347 = vst [vmem:[%s183 + $0x288] sm:%s175] %v346
                %v348 = vld [vmem:[%s182 + $0x520] sm:%s175]
                %349 = vst [vmem:[%s183 + $0x290] sm:%s175] %v348
                %v350 = vld [vmem:[%s182 + $0x530] sm:%s175]
                %351 = vst [vmem:[%s183 + $0x298] sm:%s175] %v350
                %v352 = vld [vmem:[%s182 + $0x540] sm:%s175]
                %353 = vst [vmem:[%s183 + $0x2a0] sm:%s175] %v352
                %v354 = vld [vmem:[%s182 + $0x550] sm:%s175]
                %355 = vst [vmem:[%s183 + $0x2a8] sm:%s175] %v354
                %v356 = vld [vmem:[%s182 + $0x560] sm:%s175]
                %357 = vst [vmem:[%s183 + $0x2b0] sm:%s175] %v356
                %v358 = vld [vmem:[%s182 + $0x570] sm:%s175]
                %359 = vst [vmem:[%s183 + $0x2b8] sm:%s175] %v358
                %v360 = vld [vmem:[%s182 + $0x580] sm:%s175]
                %361 = vst [vmem:[%s183 + $0x2c0] sm:%s175] %v360
                %v362 = vld [vmem:[%s182 + $0x590] sm:%s175]
                %363 = vst [vmem:[%s183 + $0x2c8] sm:%s175] %v362
                %v364 = vld [vmem:[%s182 + $0x5a0] sm:%s175]
                %365 = vst [vmem:[%s183 + $0x2d0] sm:%s175] %v364
                %v366 = vld [vmem:[%s182 + $0x5b0] sm:%s175]
                %367 = vst [vmem:[%s183 + $0x2d8] sm:%s175] %v366
                %v368 = vld [vmem:[%s182 + $0x5c0] sm:%s175]
                %369 = vst [vmem:[%s183 + $0x2e0] sm:%s175] %v368
                %v370 = vld [vmem:[%s182 + $0x5d0] sm:%s175]
                %371 = vst [vmem:[%s183 + $0x2e8] sm:%s175] %v370
                %v372 = vld [vmem:[%s182 + $0x5e0] sm:%s175]
                %373 = vst [vmem:[%s183 + $0x2f0] sm:%s175] %v372
                %v374 = vld [vmem:[%s182 + $0x5f0] sm:%s175]
                %375 = vst [vmem:[%s183 + $0x2f8] sm:%s175] %v374
                %v376 = vld [vmem:[%s182 + $0x600] sm:%s175]
                %377 = vst [vmem:[%s183 + $0x300] sm:%s175] %v376
                %v378 = vld [vmem:[%s182 + $0x610] sm:%s175]
                %379 = vst [vmem:[%s183 + $0x308] sm:%s175] %v378
                %v380 = vld [vmem:[%s182 + $0x620] sm:%s175]
                %381 = vst [vmem:[%s183 + $0x310] sm:%s175] %v380
                %v382 = vld [vmem:[%s182 + $0x630] sm:%s175]
                %383 = vst [vmem:[%s183 + $0x318] sm:%s175] %v382
                %v384 = vld [vmem:[%s182 + $0x640] sm:%s175]
                %385 = vst [vmem:[%s183 + $0x320] sm:%s175] %v384
                %v386 = vld [vmem:[%s182 + $0x650] sm:%s175]
                %387 = vst [vmem:[%s183 + $0x328] sm:%s175] %v386
                %v388 = vld [vmem:[%s182 + $0x660] sm:%s175]
                %389 = vst [vmem:[%s183 + $0x330] sm:%s175] %v388
                %v390 = vld [vmem:[%s182 + $0x670] sm:%s175]
                %391 = vst [vmem:[%s183 + $0x338] sm:%s175] %v390
                %v392 = vld [vmem:[%s182 + $0x680] sm:%s175]
                %393 = vst [vmem:[%s183 + $0x340] sm:%s175] %v392
                %v394 = vld [vmem:[%s182 + $0x690] sm:%s175]
                %395 = vst [vmem:[%s183 + $0x348] sm:%s175] %v394
                %v396 = vld [vmem:[%s182 + $0x6a0] sm:%s175]
                %397 = vst [vmem:[%s183 + $0x350] sm:%s175] %v396
                %v398 = vld [vmem:[%s182 + $0x6b0] sm:%s175]
                %399 = vst [vmem:[%s183 + $0x358] sm:%s175] %v398
                %v400 = vld [vmem:[%s182 + $0x6c0] sm:%s175]
                %401 = vst [vmem:[%s183 + $0x360] sm:%s175] %v400
                %v402 = vld [vmem:[%s182 + $0x6d0] sm:%s175]
                %403 = vst [vmem:[%s183 + $0x368] sm:%s175] %v402
                %v404 = vld [vmem:[%s182 + $0x6e0] sm:%s175]
                %405 = vst [vmem:[%s183 + $0x370] sm:%s175] %v404
                %v406 = vld [vmem:[%s182 + $0x6f0] sm:%s175]
                %407 = vst [vmem:[%s183 + $0x378] sm:%s175] %v406
                %v408 = vld [vmem:[%s182 + $0x700] sm:%s175]
                %409 = vst [vmem:[%s183 + $0x380] sm:%s175] %v408
                %v410 = vld [vmem:[%s182 + $0x710] sm:%s175]
                %411 = vst [vmem:[%s183 + $0x388] sm:%s175] %v410
                %v412 = vld [vmem:[%s182 + $0x720] sm:%s175]
                %413 = vst [vmem:[%s183 + $0x390] sm:%s175] %v412
                %v414 = vld [vmem:[%s182 + $0x730] sm:%s175]
                %415 = vst [vmem:[%s183 + $0x398] sm:%s175] %v414
                %v416 = vld [vmem:[%s182 + $0x740] sm:%s175]
                %417 = vst [vmem:[%s183 + $0x3a0] sm:%s175] %v416
                %v418 = vld [vmem:[%s182 + $0x750] sm:%s175]
                %419 = vst [vmem:[%s183 + $0x3a8] sm:%s175] %v418
                %v420 = vld [vmem:[%s182 + $0x760] sm:%s175]
                %421 = vst [vmem:[%s183 + $0x3b0] sm:%s175] %v420
                %v422 = vld [vmem:[%s182 + $0x770] sm:%s175]
                %423 = vst [vmem:[%s183 + $0x3b8] sm:%s175] %v422
                %v424 = vld [vmem:[%s182 + $0x780] sm:%s175]
                %425 = vst [vmem:[%s183 + $0x3c0] sm:%s175] %v424
                %v426 = vld [vmem:[%s182 + $0x790] sm:%s175]
                %427 = vst [vmem:[%s183 + $0x3c8] sm:%s175] %v426
                %v428 = vld [vmem:[%s182 + $0x7a0] sm:%s175]
                %429 = vst [vmem:[%s183 + $0x3d0] sm:%s175] %v428
                %v430 = vld [vmem:[%s182 + $0x7b0] sm:%s175]
                %431 = vst [vmem:[%s183 + $0x3d8] sm:%s175] %v430
                %v432 = vld [vmem:[%s182 + $0x7c0] sm:%s175]
                %433 = vst [vmem:[%s183 + $0x3e0] sm:%s175] %v432
                %v434 = vld [vmem:[%s182 + $0x7d0] sm:%s175]
                %435 = vst [vmem:[%s183 + $0x3e8] sm:%s175] %v434
                %v436 = vld [vmem:[%s182 + $0x7e0] sm:%s175]
                %437 = vst [vmem:[%s183 + $0x3f0] sm:%s175] %v436
                %v438 = vld [vmem:[%s182 + $0x7f0] sm:%s175]
                %439 = vst [vmem:[%s183 + $0x3f8] sm:%s175] %v438
                %v440 = vld [vmem:[%s182 + $0x800] sm:%s175]
                %441 = vst [vmem:[%s183 + $0x400] sm:%s175] %v440
                %v442 = vld [vmem:[%s182 + $0x810] sm:%s175]
                %443 = vst [vmem:[%s183 + $0x408] sm:%s175] %v442
                %v444 = vld [vmem:[%s182 + $0x820] sm:%s175]
                %445 = vst [vmem:[%s183 + $0x410] sm:%s175] %v444
                %v446 = vld [vmem:[%s182 + $0x830] sm:%s175]
                %447 = vst [vmem:[%s183 + $0x418] sm:%s175] %v446
                %v448 = vld [vmem:[%s182 + $0x840] sm:%s175]
                %449 = vst [vmem:[%s183 + $0x420] sm:%s175] %v448
                %v450 = vld [vmem:[%s182 + $0x850] sm:%s175]
                %451 = vst [vmem:[%s183 + $0x428] sm:%s175] %v450
                %v452 = vld [vmem:[%s182 + $0x860] sm:%s175]
                %453 = vst [vmem:[%s183 + $0x430] sm:%s175] %v452
                %v454 = vld [vmem:[%s182 + $0x870] sm:%s175]
                %455 = vst [vmem:[%s183 + $0x438] sm:%s175] %v454
                %v456 = vld [vmem:[%s182 + $0x880] sm:%s175]
                %457 = vst [vmem:[%s183 + $0x440] sm:%s175] %v456
                %v458 = vld [vmem:[%s182 + $0x890] sm:%s175]
                %459 = vst [vmem:[%s183 + $0x448] sm:%s175] %v458
                %v460 = vld [vmem:[%s182 + $0x8a0] sm:%s175]
                %461 = vst [vmem:[%s183 + $0x450] sm:%s175] %v460
                %v462 = vld [vmem:[%s182 + $0x8b0] sm:%s175]
                %463 = vst [vmem:[%s183 + $0x458] sm:%s175] %v462
                %v464 = vld [vmem:[%s182 + $0x8c0] sm:%s175]
                %465 = vst [vmem:[%s183 + $0x460] sm:%s175] %v464
                %v466 = vld [vmem:[%s182 + $0x8d0] sm:%s175]
                %467 = vst [vmem:[%s183 + $0x468] sm:%s175] %v466
                %v468 = vld [vmem:[%s182 + $0x8e0] sm:%s175]
                %469 = vst [vmem:[%s183 + $0x470] sm:%s175] %v468
                %v470 = vld [vmem:[%s182 + $0x8f0] sm:%s175]
                %471 = vst [vmem:[%s183 + $0x478] sm:%s175] %v470
              $region41: #{basic_block_forward.2} parent=35 // loop_footer
                %s181 = sadd.s32 1, %s177
              $region42: #{basic_block_forward.2} parent=35 // loop_footer_branch
                %176 = sbr.rel target = $region38
              $region43: #{basic_block_forward.2} parent=35 // loop_exit
                _
            $region36: #{basic_block_forward.2} parent=27 // pred_fallthru
              _
          $region28: #{basic_block_forward.2} parent=23 // pred_fallthru
            _
          %772 = vnop
        $region24: #{basic_block_forward.2} parent=19 // pred_fallthru
          _
      $region20: #{basic_block_forward.2} parent=5 // pred_fallthru
        _
      %p773 = scmp.le.s32.totalorder 1, %s10
      %p774 = scmp.lt.s32.totalorder %s10, 3
      %p775 = pnand %p773, %p774
      %p776 = pneg %p775
      // Predicated region
      $region59: #{basic_block_forward.2} parent=5 // pred_check
        _
      $region60: #{basic_block_forward.2} parent=5 // pred_check_branch
        %778 = sbr.rel (%p775) target = $region62
      $region61: #{basic_block_forward.2} parent=5 // pred_region
        %s779 = ssub.s32 %s10, 1
        %s780 = sand.u32 %s61, 1
        %s781 = sand.u32 %s61, 1
        %s782 = smul.addr %s781, 1152
        %s783 = scalar_lea.vmem [#allocation2], %s782
        // Predicated region
        $region63: #{basic_block_forward.2} parent=61 // pred_check
          %p784 = pneg %p74
        $region64: #{basic_block_forward.2} parent=61 // pred_check_branch
          %786 = sbr.rel (%p784) target = $region66
        $region65: #{basic_block_forward.2} parent=61 // pred_region
          _
        $region66: #{basic_block_forward.2} parent=61 // pred_fallthru
          _
        %s787 = smul.u32 16, %s19
        %p788 = scmp.lt.s32.totalorder %s787, 15
        %s789 = scalar_select %p788, %s787, 15
        %s790 = smul.addr %s789, 9
        %s791 = smul.addr %s790, 8
        %s792 = scalar_lea.vmem %s0, %s791
        %p793 = pneg %p48
        %p794 = pneg %p45
        %s795 = sand.u32 %s61, 1
        %s796 = sand.u32 %s61, 1
        %s797 = smul.addr %s796, 1152
        %s798 = scalar_lea.vmem [#allocation2], %s797
        %p799 = pneg %p74
        %p800 = pneg %p71
        %p801 = pneg %p102
        %p802 = pneg %p99
        %s803 = sand.u32 %s89, 1
        %s804 = sand.u32 %s89, 1
        %s805 = smul.addr %s804, 128
        %s806 = scalar_lea.vmem [#allocation3], %s805
        %p807 = pneg %p130
        %p808 = pneg %p127
        %p809 = scmp.lt.s32.totalorder %s19, 0
        %s810 = scalar_select %p809, %s19, 0
        %p811 = scmp.lt.s32.totalorder %s20, 1
        %s812 = scalar_select %p811, %s20, 1
        %s813 = smul.addr %s810, 2
        %s814 = sadd.s32 %s812, %s813
        %s815 = smul.addr %s814, 2
        %s816 = scalar_lea.vmem %s3, %s815
        %s817 = smul.u32 16, %s19
        %p818 = scmp.lt.s32.totalorder %s817, 15
        %s819 = scalar_select %p818, %s817, 15
        %s820 = smul.addr %s819, 9
        %s821 = smul.addr %s820, 8
        %s822 = scalar_lea.vmem %s0, %s821
        %s823 = smul.u32 16, %s19
        %s824 = smul.u32 16, %s19
        %p825 = scmp.lt.s32.totalorder %s19, 0
        %s826 = scalar_select %p825, %s19, 0
        %p827 = scmp.lt.s32.totalorder %s20, 1
        %s828 = scalar_select %p827, %s20, 1
        %s829 = smul.addr %s826, 2
        %s830 = sadd.s32 %s828, %s829
        %s831 = smul.addr %s830, 2
        %s832 = scalar_lea.vmem %s3, %s831
        %v833 = vld [vmem:[%s822] sm:$0xff]
        %v834 = vld [vmem:[%s822 + $0x8] sm:$0xff]
        %v835 = vld [vmem:[%s822 + $0x10] sm:$0xff]
        %v836 = vld [vmem:[%s822 + $0x18] sm:$0xff]
        %v837 = vld [vmem:[%s822 + $0x20] sm:$0xff]
        %v838 = vld [vmem:[%s822 + $0x28] sm:$0xff]
        %v839 = vld [vmem:[%s822 + $0x30] sm:$0xff]
        %v840 = vld [vmem:[%s822 + $0x38] sm:$0xff]
        %v841 = vld [vmem:[%s822 + $0x40] sm:$0xff]
        %v842 = vld [vmem:[%s822 + $0x48] sm:$0xff]
        %v843 = vld [vmem:[%s822 + $0x50] sm:$0xff]
        %v844 = vld [vmem:[%s822 + $0x58] sm:$0xff]
        %v845 = vld [vmem:[%s822 + $0x60] sm:$0xff]
        %v846 = vld [vmem:[%s822 + $0x68] sm:$0xff]
        %v847 = vld [vmem:[%s822 + $0x70] sm:$0xff]
        %v848 = vld [vmem:[%s822 + $0x78] sm:$0xff]
        %v849 = vld [vmem:[%s822 + $0x80] sm:$0xff]
        %v850 = vld [vmem:[%s822 + $0x88] sm:$0xff]
        %v851 = vld [vmem:[%s822 + $0x90] sm:$0xff]
        %v852 = vld [vmem:[%s822 + $0x98] sm:$0xff]
        %v853 = vld [vmem:[%s822 + $0xa0] sm:$0xff]
        %v854 = vld [vmem:[%s822 + $0xa8] sm:$0xff]
        %v855 = vld [vmem:[%s822 + $0xb0] sm:$0xff]
        %v856 = vld [vmem:[%s822 + $0xb8] sm:$0xff]
        %v857 = vld [vmem:[%s822 + $0xc0] sm:$0xff]
        %v858 = vld [vmem:[%s822 + $0xc8] sm:$0xff]
        %v859 = vld [vmem:[%s822 + $0xd0] sm:$0xff]
        %v860 = vld [vmem:[%s822 + $0xd8] sm:$0xff]
        %v861 = vld [vmem:[%s822 + $0xe0] sm:$0xff]
        %v862 = vld [vmem:[%s822 + $0xe8] sm:$0xff]
        %v863 = vld [vmem:[%s822 + $0xf0] sm:$0xff]
        %v864 = vld [vmem:[%s822 + $0xf8] sm:$0xff]
        %v865 = vld [vmem:[%s822 + $0x100] sm:$0xff]
        %v866 = vld [vmem:[%s822 + $0x108] sm:$0xff]
        %v867 = vld [vmem:[%s822 + $0x110] sm:$0xff]
        %v868 = vld [vmem:[%s822 + $0x118] sm:$0xff]
        %v869 = vld [vmem:[%s822 + $0x120] sm:$0xff]
        %v870 = vld [vmem:[%s822 + $0x128] sm:$0xff]
        %v871 = vld [vmem:[%s822 + $0x130] sm:$0xff]
        %v872 = vld [vmem:[%s822 + $0x138] sm:$0xff]
        %v873 = vld [vmem:[%s822 + $0x140] sm:$0xff]
        %v874 = vld [vmem:[%s822 + $0x148] sm:$0xff]
        %v875 = vld [vmem:[%s822 + $0x150] sm:$0xff]
        %v876 = vld [vmem:[%s822 + $0x158] sm:$0xff]
        %v877 = vld [vmem:[%s822 + $0x160] sm:$0xff]
        %v878 = vld [vmem:[%s822 + $0x168] sm:$0xff]
        %v879 = vld [vmem:[%s822 + $0x170] sm:$0xff]
        %v880 = vld [vmem:[%s822 + $0x178] sm:$0xff]
        %v881 = vld [vmem:[%s822 + $0x180] sm:$0xff]
        %v882 = vld [vmem:[%s822 + $0x188] sm:$0xff]
        %v883 = vld [vmem:[%s822 + $0x190] sm:$0xff]
        %v884 = vld [vmem:[%s822 + $0x198] sm:$0xff]
        %v885 = vld [vmem:[%s822 + $0x1a0] sm:$0xff]
        %v886 = vld [vmem:[%s822 + $0x1a8] sm:$0xff]
        %v887 = vld [vmem:[%s822 + $0x1b0] sm:$0xff]
        %v888 = vld [vmem:[%s822 + $0x1b8] sm:$0xff]
        %v889 = vld [vmem:[%s822 + $0x1c0] sm:$0xff]
        %v890 = vld [vmem:[%s822 + $0x1c8] sm:$0xff]
        %v891 = vld [vmem:[%s822 + $0x1d0] sm:$0xff]
        %v892 = vld [vmem:[%s822 + $0x1d8] sm:$0xff]
        %v893 = vld [vmem:[%s822 + $0x1e0] sm:$0xff]
        %v894 = vld [vmem:[%s822 + $0x1e8] sm:$0xff]
        %v895 = vld [vmem:[%s822 + $0x1f0] sm:$0xff]
        %v896 = vld [vmem:[%s822 + $0x1f8] sm:$0xff]
        %v897 = vld [vmem:[%s822 + $0x200] sm:$0xff]
        %v898 = vld [vmem:[%s822 + $0x208] sm:$0xff]
        %v899 = vld [vmem:[%s822 + $0x210] sm:$0xff]
        %v900 = vld [vmem:[%s822 + $0x218] sm:$0xff]
        %v901 = vld [vmem:[%s822 + $0x220] sm:$0xff]
        %v902 = vld [vmem:[%s822 + $0x228] sm:$0xff]
        %v903 = vld [vmem:[%s822 + $0x230] sm:$0xff]
        %v904 = vld [vmem:[%s822 + $0x238] sm:$0xff]
        %v905 = vld [vmem:[%s822 + $0x240] sm:$0xff]
        %v906 = vld [vmem:[%s822 + $0x248] sm:$0xff]
        %v907 = vld [vmem:[%s822 + $0x250] sm:$0xff]
        %v908 = vld [vmem:[%s822 + $0x258] sm:$0xff]
        %v909 = vld [vmem:[%s822 + $0x260] sm:$0xff]
        %v910 = vld [vmem:[%s822 + $0x268] sm:$0xff]
        %v911 = vld [vmem:[%s822 + $0x270] sm:$0xff]
        %v912 = vld [vmem:[%s822 + $0x278] sm:$0xff]
        %v913 = vld [vmem:[%s822 + $0x280] sm:$0xff]
        %v914 = vld [vmem:[%s822 + $0x288] sm:$0xff]
        %v915 = vld [vmem:[%s822 + $0x290] sm:$0xff]
        %v916 = vld [vmem:[%s822 + $0x298] sm:$0xff]
        %v917 = vld [vmem:[%s822 + $0x2a0] sm:$0xff]
        %v918 = vld [vmem:[%s822 + $0x2a8] sm:$0xff]
        %v919 = vld [vmem:[%s822 + $0x2b0] sm:$0xff]
        %v920 = vld [vmem:[%s822 + $0x2b8] sm:$0xff]
        %v921 = vld [vmem:[%s822 + $0x2c0] sm:$0xff]
        %v922 = vld [vmem:[%s822 + $0x2c8] sm:$0xff]
        %v923 = vld [vmem:[%s822 + $0x2d0] sm:$0xff]
        %v924 = vld [vmem:[%s822 + $0x2d8] sm:$0xff]
        %v925 = vld [vmem:[%s822 + $0x2e0] sm:$0xff]
        %v926 = vld [vmem:[%s822 + $0x2e8] sm:$0xff]
        %v927 = vld [vmem:[%s822 + $0x2f0] sm:$0xff]
        %v928 = vld [vmem:[%s822 + $0x2f8] sm:$0xff]
        %v929 = vld [vmem:[%s822 + $0x300] sm:$0xff]
        %v930 = vld [vmem:[%s822 + $0x308] sm:$0xff]
        %v931 = vld [vmem:[%s822 + $0x310] sm:$0xff]
        %v932 = vld [vmem:[%s822 + $0x318] sm:$0xff]
        %v933 = vld [vmem:[%s822 + $0x320] sm:$0xff]
        %v934 = vld [vmem:[%s822 + $0x328] sm:$0xff]
        %v935 = vld [vmem:[%s822 + $0x330] sm:$0xff]
        %v936 = vld [vmem:[%s822 + $0x338] sm:$0xff]
        %v937 = vld [vmem:[%s822 + $0x340] sm:$0xff]
        %v938 = vld [vmem:[%s822 + $0x348] sm:$0xff]
        %v939 = vld [vmem:[%s822 + $0x350] sm:$0xff]
        %v940 = vld [vmem:[%s822 + $0x358] sm:$0xff]
        %v941 = vld [vmem:[%s822 + $0x360] sm:$0xff]
        %v942 = vld [vmem:[%s822 + $0x368] sm:$0xff]
        %v943 = vld [vmem:[%s822 + $0x370] sm:$0xff]
        %v944 = vld [vmem:[%s822 + $0x378] sm:$0xff]
        %v945 = vld [vmem:[%s822 + $0x380] sm:$0xff]
        %v946 = vld [vmem:[%s822 + $0x388] sm:$0xff]
        %v947 = vld [vmem:[%s822 + $0x390] sm:$0xff]
        %v948 = vld [vmem:[%s822 + $0x398] sm:$0xff]
        %v949 = vld [vmem:[%s822 + $0x3a0] sm:$0xff]
        %v950 = vld [vmem:[%s822 + $0x3a8] sm:$0xff]
        %v951 = vld [vmem:[%s822 + $0x3b0] sm:$0xff]
        %v952 = vld [vmem:[%s822 + $0x3b8] sm:$0xff]
        %v953 = vld [vmem:[%s822 + $0x3c0] sm:$0xff]
        %v954 = vld [vmem:[%s822 + $0x3c8] sm:$0xff]
        %v955 = vld [vmem:[%s822 + $0x3d0] sm:$0xff]
        %v956 = vld [vmem:[%s822 + $0x3d8] sm:$0xff]
        %v957 = vld [vmem:[%s822 + $0x3e0] sm:$0xff]
        %v958 = vld [vmem:[%s822 + $0x3e8] sm:$0xff]
        %v959 = vld [vmem:[%s822 + $0x3f0] sm:$0xff]
        %v960 = vld [vmem:[%s822 + $0x3f8] sm:$0xff]
        %v961 = vld [vmem:[%s822 + $0x400] sm:$0xff]
        %v962 = vld [vmem:[%s822 + $0x408] sm:$0xff]
        %v963 = vld [vmem:[%s822 + $0x410] sm:$0xff]
        %v964 = vld [vmem:[%s822 + $0x418] sm:$0xff]
        %v965 = vld [vmem:[%s822 + $0x420] sm:$0xff]
        %v966 = vld [vmem:[%s822 + $0x428] sm:$0xff]
        %v967 = vld [vmem:[%s822 + $0x430] sm:$0xff]
        %v968 = vld [vmem:[%s822 + $0x438] sm:$0xff]
        %v969 = vld [vmem:[%s822 + $0x440] sm:$0xff]
        %v970 = vld [vmem:[%s822 + $0x448] sm:$0xff]
        %v971 = vld [vmem:[%s822 + $0x450] sm:$0xff]
        %v972 = vld [vmem:[%s822 + $0x458] sm:$0xff]
        %v973 = vld [vmem:[%s822 + $0x460] sm:$0xff]
        %v974 = vld [vmem:[%s822 + $0x468] sm:$0xff]
        %v975 = vld [vmem:[%s822 + $0x470] sm:$0xff]
        %v976 = vld [vmem:[%s822 + $0x478] sm:$0xff]
        %v977 = vld [vmem:[%s783] sm:$0xff]
        %v978 = vld [vmem:[%s783 + $0x8] sm:$0xff]
        %v979 = vld [vmem:[%s783 + $0x10] sm:$0xff]
        %v980 = vld [vmem:[%s783 + $0x18] sm:$0xff]
        %v981 = vld [vmem:[%s783 + $0x20] sm:$0xff]
        %v982 = vld [vmem:[%s783 + $0x28] sm:$0xff]
        %v983 = vld [vmem:[%s783 + $0x30] sm:$0xff]
        %v984 = vld [vmem:[%s783 + $0x38] sm:$0xff]
        %v985 = vld [vmem:[%s783 + $0x40] sm:$0xff]
        %v986 = vld [vmem:[%s783 + $0x48] sm:$0xff]
        %v987 = vld [vmem:[%s783 + $0x50] sm:$0xff]
        %v988 = vld [vmem:[%s783 + $0x58] sm:$0xff]
        %v989 = vld [vmem:[%s783 + $0x60] sm:$0xff]
        %v990 = vld [vmem:[%s783 + $0x68] sm:$0xff]
        %v991 = vld [vmem:[%s783 + $0x70] sm:$0xff]
        %v992 = vld [vmem:[%s783 + $0x78] sm:$0xff]
        %v993 = vld [vmem:[%s783 + $0x80] sm:$0xff]
        %v994 = vld [vmem:[%s783 + $0x88] sm:$0xff]
        %v995 = vld [vmem:[%s783 + $0x90] sm:$0xff]
        %v996 = vld [vmem:[%s783 + $0x98] sm:$0xff]
        %v997 = vld [vmem:[%s783 + $0xa0] sm:$0xff]
        %v998 = vld [vmem:[%s783 + $0xa8] sm:$0xff]
        %v999 = vld [vmem:[%s783 + $0xb0] sm:$0xff]
        %v1000 = vld [vmem:[%s783 + $0xb8] sm:$0xff]
        %v1001 = vld [vmem:[%s783 + $0xc0] sm:$0xff]
        %v1002 = vld [vmem:[%s783 + $0xc8] sm:$0xff]
        %v1003 = vld [vmem:[%s783 + $0xd0] sm:$0xff]
        %v1004 = vld [vmem:[%s783 + $0xd8] sm:$0xff]
        %v1005 = vld [vmem:[%s783 + $0xe0] sm:$0xff]
        %v1006 = vld [vmem:[%s783 + $0xe8] sm:$0xff]
        %v1007 = vld [vmem:[%s783 + $0xf0] sm:$0xff]
        %v1008 = vld [vmem:[%s783 + $0xf8] sm:$0xff]
        %v1009 = vld [vmem:[%s783 + $0x100] sm:$0xff]
        %v1010 = vld [vmem:[%s783 + $0x108] sm:$0xff]
        %v1011 = vld [vmem:[%s783 + $0x110] sm:$0xff]
        %v1012 = vld [vmem:[%s783 + $0x118] sm:$0xff]
        %v1013 = vld [vmem:[%s783 + $0x120] sm:$0xff]
        %v1014 = vld [vmem:[%s783 + $0x128] sm:$0xff]
        %v1015 = vld [vmem:[%s783 + $0x130] sm:$0xff]
        %v1016 = vld [vmem:[%s783 + $0x138] sm:$0xff]
        %v1017 = vld [vmem:[%s783 + $0x140] sm:$0xff]
        %v1018 = vld [vmem:[%s783 + $0x148] sm:$0xff]
        %v1019 = vld [vmem:[%s783 + $0x150] sm:$0xff]
        %v1020 = vld [vmem:[%s783 + $0x158] sm:$0xff]
        %v1021 = vld [vmem:[%s783 + $0x160] sm:$0xff]
        %v1022 = vld [vmem:[%s783 + $0x168] sm:$0xff]
        %v1023 = vld [vmem:[%s783 + $0x170] sm:$0xff]
        %v1024 = vld [vmem:[%s783 + $0x178] sm:$0xff]
        %v1025 = vld [vmem:[%s783 + $0x180] sm:$0xff]
        %v1026 = vld [vmem:[%s783 + $0x188] sm:$0xff]
        %v1027 = vld [vmem:[%s783 + $0x190] sm:$0xff]
        %v1028 = vld [vmem:[%s783 + $0x198] sm:$0xff]
        %v1029 = vld [vmem:[%s783 + $0x1a0] sm:$0xff]
        %v1030 = vld [vmem:[%s783 + $0x1a8] sm:$0xff]
        %v1031 = vld [vmem:[%s783 + $0x1b0] sm:$0xff]
        %v1032 = vld [vmem:[%s783 + $0x1b8] sm:$0xff]
        %v1033 = vld [vmem:[%s783 + $0x1c0] sm:$0xff]
        %v1034 = vld [vmem:[%s783 + $0x1c8] sm:$0xff]
        %v1035 = vld [vmem:[%s783 + $0x1d0] sm:$0xff]
        %v1036 = vld [vmem:[%s783 + $0x1d8] sm:$0xff]
        %v1037 = vld [vmem:[%s783 + $0x1e0] sm:$0xff]
        %v1038 = vld [vmem:[%s783 + $0x1e8] sm:$0xff]
        %v1039 = vld [vmem:[%s783 + $0x1f0] sm:$0xff]
        %v1040 = vld [vmem:[%s783 + $0x1f8] sm:$0xff]
        %v1041 = vld [vmem:[%s783 + $0x200] sm:$0xff]
        %v1042 = vld [vmem:[%s783 + $0x208] sm:$0xff]
        %v1043 = vld [vmem:[%s783 + $0x210] sm:$0xff]
        %v1044 = vld [vmem:[%s783 + $0x218] sm:$0xff]
        %v1045 = vld [vmem:[%s783 + $0x220] sm:$0xff]
        %v1046 = vld [vmem:[%s783 + $0x228] sm:$0xff]
        %v1047 = vld [vmem:[%s783 + $0x230] sm:$0xff]
        %v1048 = vld [vmem:[%s783 + $0x238] sm:$0xff]
        %v1049 = vld [vmem:[%s783 + $0x240] sm:$0xff]
        %v1050 = vld [vmem:[%s783 + $0x248] sm:$0xff]
        %v1051 = vld [vmem:[%s783 + $0x250] sm:$0xff]
        %v1052 = vld [vmem:[%s783 + $0x258] sm:$0xff]
        %v1053 = vld [vmem:[%s783 + $0x260] sm:$0xff]
        %v1054 = vld [vmem:[%s783 + $0x268] sm:$0xff]
        %v1055 = vld [vmem:[%s783 + $0x270] sm:$0xff]
        %v1056 = vld [vmem:[%s783 + $0x278] sm:$0xff]
        %v1057 = vld [vmem:[%s783 + $0x280] sm:$0xff]
        %v1058 = vld [vmem:[%s783 + $0x288] sm:$0xff]
        %v1059 = vld [vmem:[%s783 + $0x290] sm:$0xff]
        %v1060 = vld [vmem:[%s783 + $0x298] sm:$0xff]
        %v1061 = vld [vmem:[%s783 + $0x2a0] sm:$0xff]
        %v1062 = vld [vmem:[%s783 + $0x2a8] sm:$0xff]
        %v1063 = vld [vmem:[%s783 + $0x2b0] sm:$0xff]
        %v1064 = vld [vmem:[%s783 + $0x2b8] sm:$0xff]
        %v1065 = vld [vmem:[%s783 + $0x2c0] sm:$0xff]
        %v1066 = vld [vmem:[%s783 + $0x2c8] sm:$0xff]
        %v1067 = vld [vmem:[%s783 + $0x2d0] sm:$0xff]
        %v1068 = vld [vmem:[%s783 + $0x2d8] sm:$0xff]
        %v1069 = vld [vmem:[%s783 + $0x2e0] sm:$0xff]
        %v1070 = vld [vmem:[%s783 + $0x2e8] sm:$0xff]
        %v1071 = vld [vmem:[%s783 + $0x2f0] sm:$0xff]
        %v1072 = vld [vmem:[%s783 + $0x2f8] sm:$0xff]
        %v1073 = vld [vmem:[%s783 + $0x300] sm:$0xff]
        %v1074 = vld [vmem:[%s783 + $0x308] sm:$0xff]
        %v1075 = vld [vmem:[%s783 + $0x310] sm:$0xff]
        %v1076 = vld [vmem:[%s783 + $0x318] sm:$0xff]
        %v1077 = vld [vmem:[%s783 + $0x320] sm:$0xff]
        %v1078 = vld [vmem:[%s783 + $0x328] sm:$0xff]
        %v1079 = vld [vmem:[%s783 + $0x330] sm:$0xff]
        %v1080 = vld [vmem:[%s783 + $0x338] sm:$0xff]
        %v1081 = vld [vmem:[%s783 + $0x340] sm:$0xff]
        %v1082 = vld [vmem:[%s783 + $0x348] sm:$0xff]
        %v1083 = vld [vmem:[%s783 + $0x350] sm:$0xff]
        %v1084 = vld [vmem:[%s783 + $0x358] sm:$0xff]
        %v1085 = vld [vmem:[%s783 + $0x360] sm:$0xff]
        %v1086 = vld [vmem:[%s783 + $0x368] sm:$0xff]
        %v1087 = vld [vmem:[%s783 + $0x370] sm:$0xff]
        %v1088 = vld [vmem:[%s783 + $0x378] sm:$0xff]
        %v1089 = vld [vmem:[%s783 + $0x380] sm:$0xff]
        %v1090 = vld [vmem:[%s783 + $0x388] sm:$0xff]
        %v1091 = vld [vmem:[%s783 + $0x390] sm:$0xff]
        %v1092 = vld [vmem:[%s783 + $0x398] sm:$0xff]
        %v1093 = vld [vmem:[%s783 + $0x3a0] sm:$0xff]
        %v1094 = vld [vmem:[%s783 + $0x3a8] sm:$0xff]
        %v1095 = vld [vmem:[%s783 + $0x3b0] sm:$0xff]
        %v1096 = vld [vmem:[%s783 + $0x3b8] sm:$0xff]
        %v1097 = vld [vmem:[%s783 + $0x3c0] sm:$0xff]
        %v1098 = vld [vmem:[%s783 + $0x3c8] sm:$0xff]
        %v1099 = vld [vmem:[%s783 + $0x3d0] sm:$0xff]
        %v1100 = vld [vmem:[%s783 + $0x3d8] sm:$0xff]
        %v1101 = vld [vmem:[%s783 + $0x3e0] sm:$0xff]
        %v1102 = vld [vmem:[%s783 + $0x3e8] sm:$0xff]
        %v1103 = vld [vmem:[%s783 + $0x3f0] sm:$0xff]
        %v1104 = vld [vmem:[%s783 + $0x3f8] sm:$0xff]
        %v1105 = vld [vmem:[%s783 + $0x400] sm:$0xff]
        %v1106 = vld [vmem:[%s783 + $0x408] sm:$0xff]
        %v1107 = vld [vmem:[%s783 + $0x410] sm:$0xff]
        %v1108 = vld [vmem:[%s783 + $0x418] sm:$0xff]
        %v1109 = vld [vmem:[%s783 + $0x420] sm:$0xff]
        %v1110 = vld [vmem:[%s783 + $0x428] sm:$0xff]
        %v1111 = vld [vmem:[%s783 + $0x430] sm:$0xff]
        %v1112 = vld [vmem:[%s783 + $0x438] sm:$0xff]
        %v1113 = vld [vmem:[%s783 + $0x440] sm:$0xff]
        %v1114 = vld [vmem:[%s783 + $0x448] sm:$0xff]
        %v1115 = vld [vmem:[%s783 + $0x450] sm:$0xff]
        %v1116 = vld [vmem:[%s783 + $0x458] sm:$0xff]
        %v1117 = vld [vmem:[%s783 + $0x460] sm:$0xff]
        %v1118 = vld [vmem:[%s783 + $0x468] sm:$0xff]
        %v1119 = vld [vmem:[%s783 + $0x470] sm:$0xff]
        %v1120 = vld [vmem:[%s783 + $0x478] sm:$0xff]
        %1121 = vmatprep.subr.mxu0 0.0
        %1122 = vmatpush1.msra.mxu0 %v992
        %1123 = vmatprep.subr.mxu0 0.0
        %1124 = vmatpush1.msra.mxu0 %v991
        %1125 = vmatprep.subr.mxu0 0.0
        %1126 = vmatpush1.msra.mxu0 %v990
        %1127 = vmatprep.subr.mxu0 0.0
        %1128 = vmatpush1.msra.mxu0 %v989
        %1129 = vmatprep.subr.mxu0 0.0
        %1130 = vmatpush1.msra.mxu0 %v988
        %1131 = vmatprep.subr.mxu0 0.0
        %1132 = vmatpush1.msra.mxu0 %v987
        %1133 = vmatprep.subr.mxu0 0.0
        %1134 = vmatpush1.msra.mxu0 %v986
        %1135 = vmatprep.subr.mxu0 0.0
        %1136 = vmatpush1.msra.mxu0 %v985
        %1137 = vmatprep.subr.mxu0 0.0
        %1138 = vmatpush1.msra.mxu0 %v984
        %1139 = vmatprep.subr.mxu0 0.0
        %1140 = vmatpush1.msra.mxu0 %v983
        %1141 = vmatprep.subr.mxu0 0.0
        %1142 = vmatpush1.msra.mxu0 %v982
        %1143 = vmatprep.subr.mxu0 0.0
        %1144 = vmatpush1.msra.mxu0 %v981
        %1145 = vmatprep.subr.mxu0 0.0
        %1146 = vmatpush1.msra.mxu0 %v980
        %1147 = vmatprep.subr.mxu0 0.0
        %1148 = vmatpush1.msra.mxu0 %v979
        %1149 = vmatprep.subr.mxu0 0.0
        %1150 = vmatpush1.msra.mxu0 %v978
        %1151 = vmatprep.subr.mxu0 0.0
        %1152 = vmatpush1.msra.mxu0 %v977
        %1153 = vmatprep.subr.mxu0 0.0
        %1154 = vmatpush2.msra.mxu0 %v1008
        %1155 = vmatprep.subr.mxu0 0.0
        %1156 = vmatpush2.msra.mxu0 %v1007
        %1157 = vmatprep.subr.mxu0 0.0
        %1158 = vmatpush2.msra.mxu0 %v1006
        %1159 = vmatprep.subr.mxu0 0.0
        %1160 = vmatpush2.msra.mxu0 %v1005
        %1161 = vmatprep.subr.mxu0 0.0
        %1162 = vmatpush2.msra.mxu0 %v1004
        %1163 = vmatprep.subr.mxu0 0.0
        %1164 = vmatpush2.msra.mxu0 %v1003
        %1165 = vmatprep.subr.mxu0 0.0
        %1166 = vmatpush2.msra.mxu0 %v1002
        %1167 = vmatprep.subr.mxu0 0.0
        %1168 = vmatpush2.msra.mxu0 %v1001
        %1169 = vmatprep.subr.mxu0 0.0
        %1170 = vmatpush2.msra.mxu0 %v1000
        %1171 = vmatprep.subr.mxu0 0.0
        %1172 = vmatpush2.msra.mxu0 %v999
        %1173 = vmatprep.subr.mxu0 0.0
        %1174 = vmatpush2.msra.mxu0 %v998
        %1175 = vmatprep.subr.mxu0 0.0
        %1176 = vmatpush2.msra.mxu0 %v997
        %1177 = vmatprep.subr.mxu0 0.0
        %1178 = vmatpush2.msra.mxu0 %v996
        %1179 = vmatprep.subr.mxu0 0.0
        %1180 = vmatpush2.msra.mxu0 %v995
        %1181 = vmatprep.subr.mxu0 0.0
        %1182 = vmatpush2.msra.mxu0 %v994
        %1183 = vmatprep.subr.mxu0 0.0
        %1184 = vmatpush2.msra.mxu0 %v993
        %1185 = vmatprep.mubr.f32.mxu0 %v834
        %1186 = vmatmul.mubr.f32.gmra.mxu0 %v833
        %v1187 = vpop.f32.mrf.mxu0
        %v1188 = vadd.f32 0.0, %v1187
        %v1189 = vpop.f32.mrf.mxu0
        %1190 = vmatprep.mubr.f32.mxu0 %v843
        %1191 = vmatmul.mubr.f32.gmra.mxu0 %v842
        %v1192 = vpop.f32.mrf.mxu0
        %v1193 = vadd.f32 0.0, %v1192
        %v1194 = vpop.f32.mrf.mxu0
        %1195 = vmatprep.mubr.f32.mxu0 %v852
        %1196 = vmatmul.mubr.f32.gmra.mxu0 %v851
        %v1197 = vpop.f32.mrf.mxu0
        %v1198 = vadd.f32 0.0, %v1197
        %v1199 = vpop.f32.mrf.mxu0
        %1200 = vmatprep.mubr.f32.mxu0 %v861
        %1201 = vmatmul.mubr.f32.gmra.mxu0 %v860
        %v1202 = vpop.f32.mrf.mxu0
        %v1203 = vadd.f32 0.0, %v1202
        %v1204 = vpop.f32.mrf.mxu0
        %1205 = vmatprep.mubr.f32.mxu0 %v870
        %1206 = vmatmul.mubr.f32.gmra.mxu0 %v869
        %v1207 = vpop.f32.mrf.mxu0
        %v1208 = vadd.f32 0.0, %v1207
        %v1209 = vpop.f32.mrf.mxu0
        %1210 = vmatprep.mubr.f32.mxu0 %v879
        %1211 = vmatmul.mubr.f32.gmra.mxu0 %v878
        %v1212 = vpop.f32.mrf.mxu0
        %v1213 = vadd.f32 0.0, %v1212
        %v1214 = vpop.f32.mrf.mxu0
        %1215 = vmatprep.mubr.f32.mxu0 %v888
        %1216 = vmatmul.mubr.f32.gmra.mxu0 %v887
        %v1217 = vpop.f32.mrf.mxu0
        %v1218 = vadd.f32 0.0, %v1217
        %v1219 = vpop.f32.mrf.mxu0
        %1220 = vmatprep.mubr.f32.mxu0 %v897
        %1221 = vmatmul.mubr.f32.gmra.mxu0 %v896
        %v1222 = vpop.f32.mrf.mxu0
        %v1223 = vadd.f32 0.0, %v1222
        %v1224 = vpop.f32.mrf.mxu0
        %1225 = vmatprep.mubr.f32.mxu0 %v906
        %1226 = vmatmul.mubr.f32.gmra.mxu0 %v905
        %v1227 = vpop.f32.mrf.mxu0
        %v1228 = vadd.f32 0.0, %v1227
        %v1229 = vpop.f32.mrf.mxu0
        %1230 = vmatprep.mubr.f32.mxu0 %v915
        %1231 = vmatmul.mubr.f32.gmra.mxu0 %v914
        %v1232 = vpop.f32.mrf.mxu0
        %v1233 = vadd.f32 0.0, %v1232
        %v1234 = vpop.f32.mrf.mxu0
        %1235 = vmatprep.mubr.f32.mxu0 %v924
        %1236 = vmatmul.mubr.f32.gmra.mxu0 %v923
        %v1237 = vpop.f32.mrf.mxu0
        %v1238 = vadd.f32 0.0, %v1237
        %v1239 = vpop.f32.mrf.mxu0
        %1240 = vmatprep.mubr.f32.mxu0 %v933
        %1241 = vmatmul.mubr.f32.gmra.mxu0 %v932
        %v1242 = vpop.f32.mrf.mxu0
        %v1243 = vadd.f32 0.0, %v1242
        %v1244 = vpop.f32.mrf.mxu0
        %1245 = vmatprep.mubr.f32.mxu0 %v942
        %1246 = vmatmul.mubr.f32.gmra.mxu0 %v941
        %v1247 = vpop.f32.mrf.mxu0
        %v1248 = vadd.f32 0.0, %v1247
        %v1249 = vpop.f32.mrf.mxu0
        %1250 = vmatprep.mubr.f32.mxu0 %v951
        %1251 = vmatmul.mubr.f32.gmra.mxu0 %v950
        %v1252 = vpop.f32.mrf.mxu0
        %v1253 = vadd.f32 0.0, %v1252
        %v1254 = vpop.f32.mrf.mxu0
        %1255 = vmatprep.mubr.f32.mxu0 %v960
        %1256 = vmatmul.mubr.f32.gmra.mxu0 %v959
        %v1257 = vpop.f32.mrf.mxu0
        %v1258 = vadd.f32 0.0, %v1257
        %v1259 = vpop.f32.mrf.mxu0
        %1260 = vmatprep.mubr.f32.mxu0 %v969
        %1261 = vmatmul.mubr.f32.gmra.mxu0 %v968
        %v1262 = vpop.f32.mrf.mxu0
        %v1263 = vadd.f32 0.0, %v1262
        %v1264 = vpop.f32.mrf.mxu0
        %1265 = vdwg.mxu0
        %1266 = vmatprep.subr.mxu0 0.0
        %1267 = vmatpush1.msra.mxu0 %v1024
        %1268 = vmatprep.subr.mxu0 0.0
        %1269 = vmatpush1.msra.mxu0 %v1023
        %1270 = vmatprep.subr.mxu0 0.0
        %1271 = vmatpush1.msra.mxu0 %v1022
        %1272 = vmatprep.subr.mxu0 0.0
        %1273 = vmatpush1.msra.mxu0 %v1021
        %1274 = vmatprep.subr.mxu0 0.0
        %1275 = vmatpush1.msra.mxu0 %v1020
        %1276 = vmatprep.subr.mxu0 0.0
        %1277 = vmatpush1.msra.mxu0 %v1019
        %1278 = vmatprep.subr.mxu0 0.0
        %1279 = vmatpush1.msra.mxu0 %v1018
        %1280 = vmatprep.subr.mxu0 0.0
        %1281 = vmatpush1.msra.mxu0 %v1017
        %1282 = vmatprep.subr.mxu0 0.0
        %1283 = vmatpush1.msra.mxu0 %v1016
        %1284 = vmatprep.subr.mxu0 0.0
        %1285 = vmatpush1.msra.mxu0 %v1015
        %1286 = vmatprep.subr.mxu0 0.0
        %1287 = vmatpush1.msra.mxu0 %v1014
        %1288 = vmatprep.subr.mxu0 0.0
        %1289 = vmatpush1.msra.mxu0 %v1013
        %1290 = vmatprep.subr.mxu0 0.0
        %1291 = vmatpush1.msra.mxu0 %v1012
        %1292 = vmatprep.subr.mxu0 0.0
        %1293 = vmatpush1.msra.mxu0 %v1011
        %1294 = vmatprep.subr.mxu0 0.0
        %1295 = vmatpush1.msra.mxu0 %v1010
        %1296 = vmatprep.subr.mxu0 0.0
        %1297 = vmatpush1.msra.mxu0 %v1009
        %1298 = vmatprep.subr.mxu0 0.0
        %1299 = vmatpush2.msra.mxu0 %v1040
        %1300 = vmatprep.subr.mxu0 0.0
        %1301 = vmatpush2.msra.mxu0 %v1039
        %1302 = vmatprep.subr.mxu0 0.0
        %1303 = vmatpush2.msra.mxu0 %v1038
        %1304 = vmatprep.subr.mxu0 0.0
        %1305 = vmatpush2.msra.mxu0 %v1037
        %1306 = vmatprep.subr.mxu0 0.0
        %1307 = vmatpush2.msra.mxu0 %v1036
        %1308 = vmatprep.subr.mxu0 0.0
        %1309 = vmatpush2.msra.mxu0 %v1035
        %1310 = vmatprep.subr.mxu0 0.0
        %1311 = vmatpush2.msra.mxu0 %v1034
        %1312 = vmatprep.subr.mxu0 0.0
        %1313 = vmatpush2.msra.mxu0 %v1033
        %1314 = vmatprep.subr.mxu0 0.0
        %1315 = vmatpush2.msra.mxu0 %v1032
        %1316 = vmatprep.subr.mxu0 0.0
        %1317 = vmatpush2.msra.mxu0 %v1031
        %1318 = vmatprep.subr.mxu0 0.0
        %1319 = vmatpush2.msra.mxu0 %v1030
        %1320 = vmatprep.subr.mxu0 0.0
        %1321 = vmatpush2.msra.mxu0 %v1029
        %1322 = vmatprep.subr.mxu0 0.0
        %1323 = vmatpush2.msra.mxu0 %v1028
        %1324 = vmatprep.subr.mxu0 0.0
        %1325 = vmatpush2.msra.mxu0 %v1027
        %1326 = vmatprep.subr.mxu0 0.0
        %1327 = vmatpush2.msra.mxu0 %v1026
        %1328 = vmatprep.subr.mxu0 0.0
        %1329 = vmatpush2.msra.mxu0 %v1025
        %1330 = vmatprep.mubr.f32.mxu0 %v836
        %1331 = vmatmul.mubr.f32.gmra.mxu0 %v835
        %v1332 = vpop.f32.mrf.mxu0
        %v1333 = vadd.f32 %v1188, %v1332
        %v1334 = vpop.f32.mrf.mxu0
        %1335 = vmatprep.mubr.f32.mxu0 %v845
        %1336 = vmatmul.mubr.f32.gmra.mxu0 %v844
        %v1337 = vpop.f32.mrf.mxu0
        %v1338 = vadd.f32 %v1193, %v1337
        %v1339 = vpop.f32.mrf.mxu0
        %1340 = vmatprep.mubr.f32.mxu0 %v854
        %1341 = vmatmul.mubr.f32.gmra.mxu0 %v853
        %v1342 = vpop.f32.mrf.mxu0
        %v1343 = vadd.f32 %v1198, %v1342
        %v1344 = vpop.f32.mrf.mxu0
        %1345 = vmatprep.mubr.f32.mxu0 %v863
        %1346 = vmatmul.mubr.f32.gmra.mxu0 %v862
        %v1347 = vpop.f32.mrf.mxu0
        %v1348 = vadd.f32 %v1203, %v1347
        %v1349 = vpop.f32.mrf.mxu0
        %1350 = vmatprep.mubr.f32.mxu0 %v872
        %1351 = vmatmul.mubr.f32.gmra.mxu0 %v871
        %v1352 = vpop.f32.mrf.mxu0
        %v1353 = vadd.f32 %v1208, %v1352
        %v1354 = vpop.f32.mrf.mxu0
        %1355 = vmatprep.mubr.f32.mxu0 %v881
        %1356 = vmatmul.mubr.f32.gmra.mxu0 %v880
        %v1357 = vpop.f32.mrf.mxu0
        %v1358 = vadd.f32 %v1213, %v1357
        %v1359 = vpop.f32.mrf.mxu0
        %1360 = vmatprep.mubr.f32.mxu0 %v890
        %1361 = vmatmul.mubr.f32.gmra.mxu0 %v889
        %v1362 = vpop.f32.mrf.mxu0
        %v1363 = vadd.f32 %v1218, %v1362
        %v1364 = vpop.f32.mrf.mxu0
        %1365 = vmatprep.mubr.f32.mxu0 %v899
        %1366 = vmatmul.mubr.f32.gmra.mxu0 %v898
        %v1367 = vpop.f32.mrf.mxu0
        %v1368 = vadd.f32 %v1223, %v1367
        %v1369 = vpop.f32.mrf.mxu0
        %1370 = vmatprep.mubr.f32.mxu0 %v908
        %1371 = vmatmul.mubr.f32.gmra.mxu0 %v907
        %v1372 = vpop.f32.mrf.mxu0
        %v1373 = vadd.f32 %v1228, %v1372
        %v1374 = vpop.f32.mrf.mxu0
        %1375 = vmatprep.mubr.f32.mxu0 %v917
        %1376 = vmatmul.mubr.f32.gmra.mxu0 %v916
        %v1377 = vpop.f32.mrf.mxu0
        %v1378 = vadd.f32 %v1233, %v1377
        %v1379 = vpop.f32.mrf.mxu0
        %1380 = vmatprep.mubr.f32.mxu0 %v926
        %1381 = vmatmul.mubr.f32.gmra.mxu0 %v925
        %v1382 = vpop.f32.mrf.mxu0
        %v1383 = vadd.f32 %v1238, %v1382
        %v1384 = vpop.f32.mrf.mxu0
        %1385 = vmatprep.mubr.f32.mxu0 %v935
        %1386 = vmatmul.mubr.f32.gmra.mxu0 %v934
        %v1387 = vpop.f32.mrf.mxu0
        %v1388 = vadd.f32 %v1243, %v1387
        %v1389 = vpop.f32.mrf.mxu0
        %1390 = vmatprep.mubr.f32.mxu0 %v944
        %1391 = vmatmul.mubr.f32.gmra.mxu0 %v943
        %v1392 = vpop.f32.mrf.mxu0
        %v1393 = vadd.f32 %v1248, %v1392
        %v1394 = vpop.f32.mrf.mxu0
        %1395 = vmatprep.mubr.f32.mxu0 %v953
        %1396 = vmatmul.mubr.f32.gmra.mxu0 %v952
        %v1397 = vpop.f32.mrf.mxu0
        %v1398 = vadd.f32 %v1253, %v1397
        %v1399 = vpop.f32.mrf.mxu0
        %1400 = vmatprep.mubr.f32.mxu0 %v962
        %1401 = vmatmul.mubr.f32.gmra.mxu0 %v961
        %v1402 = vpop.f32.mrf.mxu0
        %v1403 = vadd.f32 %v1258, %v1402
        %v1404 = vpop.f32.mrf.mxu0
        %1405 = vmatprep.mubr.f32.mxu0 %v971
        %1406 = vmatmul.mubr.f32.gmra.mxu0 %v970
        %v1407 = vpop.f32.mrf.mxu0
        %v1408 = vadd.f32 %v1263, %v1407
        %v1409 = vpop.f32.mrf.mxu0
        %1410 = vdwg.mxu0
        %1411 = vmatprep.subr.mxu0 0.0
        %1412 = vmatpush1.msra.mxu0 %v1056
        %1413 = vmatprep.subr.mxu0 0.0
        %1414 = vmatpush1.msra.mxu0 %v1055
        %1415 = vmatprep.subr.mxu0 0.0
        %1416 = vmatpush1.msra.mxu0 %v1054
        %1417 = vmatprep.subr.mxu0 0.0
        %1418 = vmatpush1.msra.mxu0 %v1053
        %1419 = vmatprep.subr.mxu0 0.0
        %1420 = vmatpush1.msra.mxu0 %v1052
        %1421 = vmatprep.subr.mxu0 0.0
        %1422 = vmatpush1.msra.mxu0 %v1051
        %1423 = vmatprep.subr.mxu0 0.0
        %1424 = vmatpush1.msra.mxu0 %v1050
        %1425 = vmatprep.subr.mxu0 0.0
        %1426 = vmatpush1.msra.mxu0 %v1049
        %1427 = vmatprep.subr.mxu0 0.0
        %1428 = vmatpush1.msra.mxu0 %v1048
        %1429 = vmatprep.subr.mxu0 0.0
        %1430 = vmatpush1.msra.mxu0 %v1047
        %1431 = vmatprep.subr.mxu0 0.0
        %1432 = vmatpush1.msra.mxu0 %v1046
        %1433 = vmatprep.subr.mxu0 0.0
        %1434 = vmatpush1.msra.mxu0 %v1045
        %1435 = vmatprep.subr.mxu0 0.0
        %1436 = vmatpush1.msra.mxu0 %v1044
        %1437 = vmatprep.subr.mxu0 0.0
        %1438 = vmatpush1.msra.mxu0 %v1043
        %1439 = vmatprep.subr.mxu0 0.0
        %1440 = vmatpush1.msra.mxu0 %v1042
        %1441 = vmatprep.subr.mxu0 0.0
        %1442 = vmatpush1.msra.mxu0 %v1041
        %1443 = vmatprep.subr.mxu0 0.0
        %1444 = vmatpush2.msra.mxu0 %v1072
        %1445 = vmatprep.subr.mxu0 0.0
        %1446 = vmatpush2.msra.mxu0 %v1071
        %1447 = vmatprep.subr.mxu0 0.0
        %1448 = vmatpush2.msra.mxu0 %v1070
        %1449 = vmatprep.subr.mxu0 0.0
        %1450 = vmatpush2.msra.mxu0 %v1069
        %1451 = vmatprep.subr.mxu0 0.0
        %1452 = vmatpush2.msra.mxu0 %v1068
        %1453 = vmatprep.subr.mxu0 0.0
        %1454 = vmatpush2.msra.mxu0 %v1067
        %1455 = vmatprep.subr.mxu0 0.0
        %1456 = vmatpush2.msra.mxu0 %v1066
        %1457 = vmatprep.subr.mxu0 0.0
        %1458 = vmatpush2.msra.mxu0 %v1065
        %1459 = vmatprep.subr.mxu0 0.0
        %1460 = vmatpush2.msra.mxu0 %v1064
        %1461 = vmatprep.subr.mxu0 0.0
        %1462 = vmatpush2.msra.mxu0 %v1063
        %1463 = vmatprep.subr.mxu0 0.0
        %1464 = vmatpush2.msra.mxu0 %v1062
        %1465 = vmatprep.subr.mxu0 0.0
        %1466 = vmatpush2.msra.mxu0 %v1061
        %1467 = vmatprep.subr.mxu0 0.0
        %1468 = vmatpush2.msra.mxu0 %v1060
        %1469 = vmatprep.subr.mxu0 0.0
        %1470 = vmatpush2.msra.mxu0 %v1059
        %1471 = vmatprep.subr.mxu0 0.0
        %1472 = vmatpush2.msra.mxu0 %v1058
        %1473 = vmatprep.subr.mxu0 0.0
        %1474 = vmatpush2.msra.mxu0 %v1057
        %1475 = vmatprep.mubr.f32.mxu0 %v838
        %1476 = vmatmul.mubr.f32.gmra.mxu0 %v837
        %v1477 = vpop.f32.mrf.mxu0
        %v1478 = vadd.f32 %v1333, %v1477
        %v1479 = vpop.f32.mrf.mxu0
        %1480 = vmatprep.mubr.f32.mxu0 %v847
        %1481 = vmatmul.mubr.f32.gmra.mxu0 %v846
        %v1482 = vpop.f32.mrf.mxu0
        %v1483 = vadd.f32 %v1338, %v1482
        %v1484 = vpop.f32.mrf.mxu0
        %1485 = vmatprep.mubr.f32.mxu0 %v856
        %1486 = vmatmul.mubr.f32.gmra.mxu0 %v855
        %v1487 = vpop.f32.mrf.mxu0
        %v1488 = vadd.f32 %v1343, %v1487
        %v1489 = vpop.f32.mrf.mxu0
        %1490 = vmatprep.mubr.f32.mxu0 %v865
        %1491 = vmatmul.mubr.f32.gmra.mxu0 %v864
        %v1492 = vpop.f32.mrf.mxu0
        %v1493 = vadd.f32 %v1348, %v1492
        %v1494 = vpop.f32.mrf.mxu0
        %1495 = vmatprep.mubr.f32.mxu0 %v874
        %1496 = vmatmul.mubr.f32.gmra.mxu0 %v873
        %v1497 = vpop.f32.mrf.mxu0
        %v1498 = vadd.f32 %v1353, %v1497
        %v1499 = vpop.f32.mrf.mxu0
        %1500 = vmatprep.mubr.f32.mxu0 %v883
        %1501 = vmatmul.mubr.f32.gmra.mxu0 %v882
        %v1502 = vpop.f32.mrf.mxu0
        %v1503 = vadd.f32 %v1358, %v1502
        %v1504 = vpop.f32.mrf.mxu0
        %1505 = vmatprep.mubr.f32.mxu0 %v892
        %1506 = vmatmul.mubr.f32.gmra.mxu0 %v891
        %v1507 = vpop.f32.mrf.mxu0
        %v1508 = vadd.f32 %v1363, %v1507
        %v1509 = vpop.f32.mrf.mxu0
        %1510 = vmatprep.mubr.f32.mxu0 %v901
        %1511 = vmatmul.mubr.f32.gmra.mxu0 %v900
        %v1512 = vpop.f32.mrf.mxu0
        %v1513 = vadd.f32 %v1368, %v1512
        %v1514 = vpop.f32.mrf.mxu0
        %1515 = vmatprep.mubr.f32.mxu0 %v910
        %1516 = vmatmul.mubr.f32.gmra.mxu0 %v909
        %v1517 = vpop.f32.mrf.mxu0
        %v1518 = vadd.f32 %v1373, %v1517
        %v1519 = vpop.f32.mrf.mxu0
        %1520 = vmatprep.mubr.f32.mxu0 %v919
        %1521 = vmatmul.mubr.f32.gmra.mxu0 %v918
        %v1522 = vpop.f32.mrf.mxu0
        %v1523 = vadd.f32 %v1378, %v1522
        %v1524 = vpop.f32.mrf.mxu0
        %1525 = vmatprep.mubr.f32.mxu0 %v928
        %1526 = vmatmul.mubr.f32.gmra.mxu0 %v927
        %v1527 = vpop.f32.mrf.mxu0
        %v1528 = vadd.f32 %v1383, %v1527
        %v1529 = vpop.f32.mrf.mxu0
        %1530 = vmatprep.mubr.f32.mxu0 %v937
        %1531 = vmatmul.mubr.f32.gmra.mxu0 %v936
        %v1532 = vpop.f32.mrf.mxu0
        %v1533 = vadd.f32 %v1388, %v1532
        %v1534 = vpop.f32.mrf.mxu0
        %1535 = vmatprep.mubr.f32.mxu0 %v946
        %1536 = vmatmul.mubr.f32.gmra.mxu0 %v945
        %v1537 = vpop.f32.mrf.mxu0
        %v1538 = vadd.f32 %v1393, %v1537
        %v1539 = vpop.f32.mrf.mxu0
        %1540 = vmatprep.mubr.f32.mxu0 %v955
        %1541 = vmatmul.mubr.f32.gmra.mxu0 %v954
        %v1542 = vpop.f32.mrf.mxu0
        %v1543 = vadd.f32 %v1398, %v1542
        %v1544 = vpop.f32.mrf.mxu0
        %1545 = vmatprep.mubr.f32.mxu0 %v964
        %1546 = vmatmul.mubr.f32.gmra.mxu0 %v963
        %v1547 = vpop.f32.mrf.mxu0
        %v1548 = vadd.f32 %v1403, %v1547
        %v1549 = vpop.f32.mrf.mxu0
        %1550 = vmatprep.mubr.f32.mxu0 %v973
        %1551 = vmatmul.mubr.f32.gmra.mxu0 %v972
        %v1552 = vpop.f32.mrf.mxu0
        %v1553 = vadd.f32 %v1408, %v1552
        %v1554 = vpop.f32.mrf.mxu0
        %1555 = vdwg.mxu0
        %1556 = vmatprep.subr.mxu0 0.0
        %1557 = vmatpush1.msra.mxu0 %v1088
        %1558 = vmatprep.subr.mxu0 0.0
        %1559 = vmatpush1.msra.mxu0 %v1087
        %1560 = vmatprep.subr.mxu0 0.0
        %1561 = vmatpush1.msra.mxu0 %v1086
        %1562 = vmatprep.subr.mxu0 0.0
        %1563 = vmatpush1.msra.mxu0 %v1085
        %1564 = vmatprep.subr.mxu0 0.0
        %1565 = vmatpush1.msra.mxu0 %v1084
        %1566 = vmatprep.subr.mxu0 0.0
        %1567 = vmatpush1.msra.mxu0 %v1083
        %1568 = vmatprep.subr.mxu0 0.0
        %1569 = vmatpush1.msra.mxu0 %v1082
        %1570 = vmatprep.subr.mxu0 0.0
        %1571 = vmatpush1.msra.mxu0 %v1081
        %1572 = vmatprep.subr.mxu0 0.0
        %1573 = vmatpush1.msra.mxu0 %v1080
        %1574 = vmatprep.subr.mxu0 0.0
        %1575 = vmatpush1.msra.mxu0 %v1079
        %1576 = vmatprep.subr.mxu0 0.0
        %1577 = vmatpush1.msra.mxu0 %v1078
        %1578 = vmatprep.subr.mxu0 0.0
        %1579 = vmatpush1.msra.mxu0 %v1077
        %1580 = vmatprep.subr.mxu0 0.0
        %1581 = vmatpush1.msra.mxu0 %v1076
        %1582 = vmatprep.subr.mxu0 0.0
        %1583 = vmatpush1.msra.mxu0 %v1075
        %1584 = vmatprep.subr.mxu0 0.0
        %1585 = vmatpush1.msra.mxu0 %v1074
        %1586 = vmatprep.subr.mxu0 0.0
        %1587 = vmatpush1.msra.mxu0 %v1073
        %1588 = vmatprep.subr.mxu0 0.0
        %1589 = vmatpush2.msra.mxu0 %v1104
        %1590 = vmatprep.subr.mxu0 0.0
        %1591 = vmatpush2.msra.mxu0 %v1103
        %1592 = vmatprep.subr.mxu0 0.0
        %1593 = vmatpush2.msra.mxu0 %v1102
        %1594 = vmatprep.subr.mxu0 0.0
        %1595 = vmatpush2.msra.mxu0 %v1101
        %1596 = vmatprep.subr.mxu0 0.0
        %1597 = vmatpush2.msra.mxu0 %v1100
        %1598 = vmatprep.subr.mxu0 0.0
        %1599 = vmatpush2.msra.mxu0 %v1099
        %1600 = vmatprep.subr.mxu0 0.0
        %1601 = vmatpush2.msra.mxu0 %v1098
        %1602 = vmatprep.subr.mxu0 0.0
        %1603 = vmatpush2.msra.mxu0 %v1097
        %1604 = vmatprep.subr.mxu0 0.0
        %1605 = vmatpush2.msra.mxu0 %v1096
        %1606 = vmatprep.subr.mxu0 0.0
        %1607 = vmatpush2.msra.mxu0 %v1095
        %1608 = vmatprep.subr.mxu0 0.0
        %1609 = vmatpush2.msra.mxu0 %v1094
        %1610 = vmatprep.subr.mxu0 0.0
        %1611 = vmatpush2.msra.mxu0 %v1093
        %1612 = vmatprep.subr.mxu0 0.0
        %1613 = vmatpush2.msra.mxu0 %v1092
        %1614 = vmatprep.subr.mxu0 0.0
        %1615 = vmatpush2.msra.mxu0 %v1091
        %1616 = vmatprep.subr.mxu0 0.0
        %1617 = vmatpush2.msra.mxu0 %v1090
        %1618 = vmatprep.subr.mxu0 0.0
        %1619 = vmatpush2.msra.mxu0 %v1089
        %1620 = vmatprep.mubr.f32.mxu0 %v840
        %1621 = vmatmul.mubr.f32.gmra.mxu0 %v839
        %v1622 = vpop.f32.mrf.mxu0
        %v1623 = vadd.f32 %v1478, %v1622
        %v1624 = vpop.f32.mrf.mxu0
        %1625 = vmatprep.mubr.f32.mxu0 %v849
        %1626 = vmatmul.mubr.f32.gmra.mxu0 %v848
        %v1627 = vpop.f32.mrf.mxu0
        %v1628 = vadd.f32 %v1483, %v1627
        %v1629 = vpop.f32.mrf.mxu0
        %1630 = vmatprep.mubr.f32.mxu0 %v858
        %1631 = vmatmul.mubr.f32.gmra.mxu0 %v857
        %v1632 = vpop.f32.mrf.mxu0
        %v1633 = vadd.f32 %v1488, %v1632
        %v1634 = vpop.f32.mrf.mxu0
        %1635 = vmatprep.mubr.f32.mxu0 %v867
        %1636 = vmatmul.mubr.f32.gmra.mxu0 %v866
        %v1637 = vpop.f32.mrf.mxu0
        %v1638 = vadd.f32 %v1493, %v1637
        %v1639 = vpop.f32.mrf.mxu0
        %1640 = vmatprep.mubr.f32.mxu0 %v876
        %1641 = vmatmul.mubr.f32.gmra.mxu0 %v875
        %v1642 = vpop.f32.mrf.mxu0
        %v1643 = vadd.f32 %v1498, %v1642
        %v1644 = vpop.f32.mrf.mxu0
        %1645 = vmatprep.mubr.f32.mxu0 %v885
        %1646 = vmatmul.mubr.f32.gmra.mxu0 %v884
        %v1647 = vpop.f32.mrf.mxu0
        %v1648 = vadd.f32 %v1503, %v1647
        %v1649 = vpop.f32.mrf.mxu0
        %1650 = vmatprep.mubr.f32.mxu0 %v894
        %1651 = vmatmul.mubr.f32.gmra.mxu0 %v893
        %v1652 = vpop.f32.mrf.mxu0
        %v1653 = vadd.f32 %v1508, %v1652
        %v1654 = vpop.f32.mrf.mxu0
        %1655 = vmatprep.mubr.f32.mxu0 %v903
        %1656 = vmatmul.mubr.f32.gmra.mxu0 %v902
        %v1657 = vpop.f32.mrf.mxu0
        %v1658 = vadd.f32 %v1513, %v1657
        %v1659 = vpop.f32.mrf.mxu0
        %1660 = vmatprep.mubr.f32.mxu0 %v912
        %1661 = vmatmul.mubr.f32.gmra.mxu0 %v911
        %v1662 = vpop.f32.mrf.mxu0
        %v1663 = vadd.f32 %v1518, %v1662
        %v1664 = vpop.f32.mrf.mxu0
        %1665 = vmatprep.mubr.f32.mxu0 %v921
        %1666 = vmatmul.mubr.f32.gmra.mxu0 %v920
        %v1667 = vpop.f32.mrf.mxu0
        %v1668 = vadd.f32 %v1523, %v1667
        %v1669 = vpop.f32.mrf.mxu0
        %1670 = vmatprep.mubr.f32.mxu0 %v930
        %1671 = vmatmul.mubr.f32.gmra.mxu0 %v929
        %v1672 = vpop.f32.mrf.mxu0
        %v1673 = vadd.f32 %v1528, %v1672
        %v1674 = vpop.f32.mrf.mxu0
        %1675 = vmatprep.mubr.f32.mxu0 %v939
        %1676 = vmatmul.mubr.f32.gmra.mxu0 %v938
        %v1677 = vpop.f32.mrf.mxu0
        %v1678 = vadd.f32 %v1533, %v1677
        %v1679 = vpop.f32.mrf.mxu0
        %1680 = vmatprep.mubr.f32.mxu0 %v948
        %1681 = vmatmul.mubr.f32.gmra.mxu0 %v947
        %v1682 = vpop.f32.mrf.mxu0
        %v1683 = vadd.f32 %v1538, %v1682
        %v1684 = vpop.f32.mrf.mxu0
        %1685 = vmatprep.mubr.f32.mxu0 %v957
        %1686 = vmatmul.mubr.f32.gmra.mxu0 %v956
        %v1687 = vpop.f32.mrf.mxu0
        %v1688 = vadd.f32 %v1543, %v1687
        %v1689 = vpop.f32.mrf.mxu0
        %1690 = vmatprep.mubr.f32.mxu0 %v966
        %1691 = vmatmul.mubr.f32.gmra.mxu0 %v965
        %v1692 = vpop.f32.mrf.mxu0
        %v1693 = vadd.f32 %v1548, %v1692
        %v1694 = vpop.f32.mrf.mxu0
        %1695 = vmatprep.mubr.f32.mxu0 %v975
        %1696 = vmatmul.mubr.f32.gmra.mxu0 %v974
        %v1697 = vpop.f32.mrf.mxu0
        %v1698 = vadd.f32 %v1553, %v1697
        %v1699 = vpop.f32.mrf.mxu0
        %1700 = vdwg.mxu0
        %1701 = vmatprep.subr.mxu0 0.0
        %1702 = vmatpush1.msra.mxu0 %v1120
        %1703 = vmatprep.subr.mxu0 0.0
        %1704 = vmatpush1.msra.mxu0 %v1119
        %1705 = vmatprep.subr.mxu0 0.0
        %1706 = vmatpush1.msra.mxu0 %v1118
        %1707 = vmatprep.subr.mxu0 0.0
        %1708 = vmatpush1.msra.mxu0 %v1117
        %1709 = vmatprep.subr.mxu0 0.0
        %1710 = vmatpush1.msra.mxu0 %v1116
        %1711 = vmatprep.subr.mxu0 0.0
        %1712 = vmatpush1.msra.mxu0 %v1115
        %1713 = vmatprep.subr.mxu0 0.0
        %1714 = vmatpush1.msra.mxu0 %v1114
        %1715 = vmatprep.subr.mxu0 0.0
        %1716 = vmatpush1.msra.mxu0 %v1113
        %1717 = vmatprep.subr.mxu0 0.0
        %1718 = vmatpush1.msra.mxu0 %v1112
        %1719 = vmatprep.subr.mxu0 0.0
        %1720 = vmatpush1.msra.mxu0 %v1111
        %1721 = vmatprep.subr.mxu0 0.0
        %1722 = vmatpush1.msra.mxu0 %v1110
        %1723 = vmatprep.subr.mxu0 0.0
        %1724 = vmatpush1.msra.mxu0 %v1109
        %1725 = vmatprep.subr.mxu0 0.0
        %1726 = vmatpush1.msra.mxu0 %v1108
        %1727 = vmatprep.subr.mxu0 0.0
        %1728 = vmatpush1.msra.mxu0 %v1107
        %1729 = vmatprep.subr.mxu0 0.0
        %1730 = vmatpush1.msra.mxu0 %v1106
        %1731 = vmatprep.subr.mxu0 0.0
        %1732 = vmatpush1.msra.mxu0 %v1105
        %1733 = vmatprep.subr.mxu0 0.0
        %1734 = vmatpush2.msra.mxu0 0.0
        %1735 = vmatprep.subr.mxu0 0.0
        %1736 = vmatpush2.msra.mxu0 0.0
        %1737 = vmatprep.subr.mxu0 0.0
        %1738 = vmatpush2.msra.mxu0 0.0
        %1739 = vmatprep.subr.mxu0 0.0
        %1740 = vmatpush2.msra.mxu0 0.0
        %1741 = vmatprep.subr.mxu0 0.0
        %1742 = vmatpush2.msra.mxu0 0.0
        %1743 = vmatprep.subr.mxu0 0.0
        %1744 = vmatpush2.msra.mxu0 0.0
        %1745 = vmatprep.subr.mxu0 0.0
        %1746 = vmatpush2.msra.mxu0 0.0
        %1747 = vmatprep.subr.mxu0 0.0
        %1748 = vmatpush2.msra.mxu0 0.0
        %1749 = vmatprep.subr.mxu0 0.0
        %1750 = vmatpush2.msra.mxu0 0.0
        %1751 = vmatprep.subr.mxu0 0.0
        %1752 = vmatpush2.msra.mxu0 0.0
        %1753 = vmatprep.subr.mxu0 0.0
        %1754 = vmatpush2.msra.mxu0 0.0
        %1755 = vmatprep.subr.mxu0 0.0
        %1756 = vmatpush2.msra.mxu0 0.0
        %1757 = vmatprep.subr.mxu0 0.0
        %1758 = vmatpush2.msra.mxu0 0.0
        %1759 = vmatprep.subr.mxu0 0.0
        %1760 = vmatpush2.msra.mxu0 0.0
        %1761 = vmatprep.subr.mxu0 0.0
        %1762 = vmatpush2.msra.mxu0 0.0
        %1763 = vmatprep.subr.mxu0 0.0
        %1764 = vmatpush2.msra.mxu0 0.0
        %1765 = vmatprep.mubr.f32.mxu0 0.0
        %1766 = vmatmul.mubr.f32.gmra.mxu0 %v841
        %v1767 = vpop.f32.mrf.mxu0
        %v1768 = vadd.f32 %v1623, %v1767
        %v1769 = vpop.f32.mrf.mxu0
        %1770 = vmatprep.mubr.f32.mxu0 0.0
        %1771 = vmatmul.mubr.f32.gmra.mxu0 %v850
        %v1772 = vpop.f32.mrf.mxu0
        %v1773 = vadd.f32 %v1628, %v1772
        %v1774 = vpop.f32.mrf.mxu0
        %1775 = vmatprep.mubr.f32.mxu0 0.0
        %1776 = vmatmul.mubr.f32.gmra.mxu0 %v859
        %v1777 = vpop.f32.mrf.mxu0
        %v1778 = vadd.f32 %v1633, %v1777
        %v1779 = vpop.f32.mrf.mxu0
        %1780 = vmatprep.mubr.f32.mxu0 0.0
        %1781 = vmatmul.mubr.f32.gmra.mxu0 %v868
        %v1782 = vpop.f32.mrf.mxu0
        %v1783 = vadd.f32 %v1638, %v1782
        %v1784 = vpop.f32.mrf.mxu0
        %1785 = vmatprep.mubr.f32.mxu0 0.0
        %1786 = vmatmul.mubr.f32.gmra.mxu0 %v877
        %v1787 = vpop.f32.mrf.mxu0
        %v1788 = vadd.f32 %v1643, %v1787
        %v1789 = vpop.f32.mrf.mxu0
        %1790 = vmatprep.mubr.f32.mxu0 0.0
        %1791 = vmatmul.mubr.f32.gmra.mxu0 %v886
        %v1792 = vpop.f32.mrf.mxu0
        %v1793 = vadd.f32 %v1648, %v1792
        %v1794 = vpop.f32.mrf.mxu0
        %1795 = vmatprep.mubr.f32.mxu0 0.0
        %1796 = vmatmul.mubr.f32.gmra.mxu0 %v895
        %v1797 = vpop.f32.mrf.mxu0
        %v1798 = vadd.f32 %v1653, %v1797
        %v1799 = vpop.f32.mrf.mxu0
        %1800 = vmatprep.mubr.f32.mxu0 0.0
        %1801 = vmatmul.mubr.f32.gmra.mxu0 %v904
        %v1802 = vpop.f32.mrf.mxu0
        %v1803 = vadd.f32 %v1658, %v1802
        %v1804 = vpop.f32.mrf.mxu0
        %1805 = vmatprep.mubr.f32.mxu0 0.0
        %1806 = vmatmul.mubr.f32.gmra.mxu0 %v913
        %v1807 = vpop.f32.mrf.mxu0
        %v1808 = vadd.f32 %v1663, %v1807
        %v1809 = vpop.f32.mrf.mxu0
        %1810 = vmatprep.mubr.f32.mxu0 0.0
        %1811 = vmatmul.mubr.f32.gmra.mxu0 %v922
        %v1812 = vpop.f32.mrf.mxu0
        %v1813 = vadd.f32 %v1668, %v1812
        %v1814 = vpop.f32.mrf.mxu0
        %1815 = vmatprep.mubr.f32.mxu0 0.0
        %1816 = vmatmul.mubr.f32.gmra.mxu0 %v931
        %v1817 = vpop.f32.mrf.mxu0
        %v1818 = vadd.f32 %v1673, %v1817
        %v1819 = vpop.f32.mrf.mxu0
        %1820 = vmatprep.mubr.f32.mxu0 0.0
        %1821 = vmatmul.mubr.f32.gmra.mxu0 %v940
        %v1822 = vpop.f32.mrf.mxu0
        %v1823 = vadd.f32 %v1678, %v1822
        %v1824 = vpop.f32.mrf.mxu0
        %1825 = vmatprep.mubr.f32.mxu0 0.0
        %1826 = vmatmul.mubr.f32.gmra.mxu0 %v949
        %v1827 = vpop.f32.mrf.mxu0
        %v1828 = vadd.f32 %v1683, %v1827
        %v1829 = vpop.f32.mrf.mxu0
        %1830 = vmatprep.mubr.f32.mxu0 0.0
        %1831 = vmatmul.mubr.f32.gmra.mxu0 %v958
        %v1832 = vpop.f32.mrf.mxu0
        %v1833 = vadd.f32 %v1688, %v1832
        %v1834 = vpop.f32.mrf.mxu0
        %1835 = vmatprep.mubr.f32.mxu0 0.0
        %1836 = vmatmul.mubr.f32.gmra.mxu0 %v967
        %v1837 = vpop.f32.mrf.mxu0
        %v1838 = vadd.f32 %v1693, %v1837
        %v1839 = vpop.f32.mrf.mxu0
        %1840 = vmatprep.mubr.f32.mxu0 0.0
        %1841 = vmatmul.mubr.f32.gmra.mxu0 %v976
        %v1842 = vpop.f32.mrf.mxu0
        %v1843 = vadd.f32 %v1698, %v1842
        %v1844 = vpop.f32.mrf.mxu0
        %1845 = vdwg.mxu0
        %1846 = vst [vmem:[%s806] sm:$0xff] %v1768
        %1847 = vst [vmem:[%s806 + $0x8] sm:$0xff] %v1773
        %1848 = vst [vmem:[%s806 + $0x10] sm:$0xff] %v1778
        %1849 = vst [vmem:[%s806 + $0x18] sm:$0xff] %v1783
        %1850 = vst [vmem:[%s806 + $0x20] sm:$0xff] %v1788
        %1851 = vst [vmem:[%s806 + $0x28] sm:$0xff] %v1793
        %1852 = vst [vmem:[%s806 + $0x30] sm:$0xff] %v1798
        %1853 = vst [vmem:[%s806 + $0x38] sm:$0xff] %v1803
        %1854 = vst [vmem:[%s806 + $0x40] sm:$0xff] %v1808
        %1855 = vst [vmem:[%s806 + $0x48] sm:$0xff] %v1813
        %1856 = vst [vmem:[%s806 + $0x50] sm:$0xff] %v1818
        %1857 = vst [vmem:[%s806 + $0x58] sm:$0xff] %v1823
        %1858 = vst [vmem:[%s806 + $0x60] sm:$0xff] %v1828
        %1859 = vst [vmem:[%s806 + $0x68] sm:$0xff] %v1833
        %1860 = vst [vmem:[%s806 + $0x70] sm:$0xff] %v1838
        %1861 = vst [vmem:[%s806 + $0x78] sm:$0xff] %v1843
        %v1862 = vadd.f32 %v1768, %v1773
        %v1863 = vadd.f32 %v1862, %v1778
        %v1864 = vadd.f32 %v1863, %v1783
        %v1865 = vadd.f32 %v1864, %v1788
        %v1866 = vadd.f32 %v1865, %v1793
        %v1867 = vadd.f32 %v1866, %v1798
        %v1868 = vadd.f32 %v1867, %v1803
        %v1869 = vadd.f32 %v1868, %v1808
        %v1870 = vadd.f32 %v1869, %v1813
        %v1871 = vadd.f32 %v1870, %v1818
        %v1872 = vadd.f32 %v1871, %v1823
        %v1873 = vadd.f32 %v1872, %v1828
        %v1874 = vadd.f32 %v1873, %v1833
        %v1875 = vadd.f32 %v1874, %v1838
        %v1876 = vadd.f32 %v1875, %v1843
        %v1877 = vrot.slane %v1876, 4
        %v1878 = vadd.f32 %v1876, %v1877
        %v1879 = vrot.slane %v1878, 2
        %v1880 = vadd.f32 %v1878, %v1879
        %v1881 = vrot.slane %v1880, 1
        %v1882 = vadd.f32 %v1880, %v1881
        %v1883 = vmul.f32 %v1768, %v1768
        %v1884 = vmul.f32 %v1773, %v1773
        %v1885 = vmul.f32 %v1778, %v1778
        %v1886 = vmul.f32 %v1783, %v1783
        %v1887 = vmul.f32 %v1788, %v1788
        %v1888 = vmul.f32 %v1793, %v1793
        %v1889 = vmul.f32 %v1798, %v1798
        %v1890 = vmul.f32 %v1803, %v1803
        %v1891 = vmul.f32 %v1808, %v1808
        %v1892 = vmul.f32 %v1813, %v1813
        %v1893 = vmul.f32 %v1818, %v1818
        %v1894 = vmul.f32 %v1823, %v1823
        %v1895 = vmul.f32 %v1828, %v1828
        %v1896 = vmul.f32 %v1833, %v1833
        %v1897 = vmul.f32 %v1838, %v1838
        %v1898 = vmul.f32 %v1843, %v1843
        %v1899 = vadd.f32 %v1883, %v1884
        %v1900 = vadd.f32 %v1899, %v1885
        %v1901 = vadd.f32 %v1900, %v1886
        %v1902 = vadd.f32 %v1901, %v1887
        %v1903 = vadd.f32 %v1902, %v1888
        %v1904 = vadd.f32 %v1903, %v1889
        %v1905 = vadd.f32 %v1904, %v1890
        %v1906 = vadd.f32 %v1905, %v1891
        %v1907 = vadd.f32 %v1906, %v1892
        %v1908 = vadd.f32 %v1907, %v1893
        %v1909 = vadd.f32 %v1908, %v1894
        %v1910 = vadd.f32 %v1909, %v1895
        %v1911 = vadd.f32 %v1910, %v1896
        %v1912 = vadd.f32 %v1911, %v1897
        %v1913 = vadd.f32 %v1912, %v1898
        %v1914 = vrot.slane %v1913, 4
        %v1915 = vadd.f32 %v1913, %v1914
        %v1916 = vrot.slane %v1915, 2
        %v1917 = vadd.f32 %v1915, %v1916
        %v1918 = vrot.slane %v1917, 1
        %v1919 = vadd.f32 %v1917, %v1918
        %vm1920 = vcmask 1040384
        %v1921 = vsel %vm1920, %v1882, %v1919
        %1922 = vst [vmem:[%s832] sm:$0x3] %v1921
        %s1923 = sand.u32 %s89, 1
        %s1924 = sand.u32 %s89, 1
        %s1925 = smul.addr %s1924, 128
        %s1926 = scalar_lea.vmem [#allocation3], %s1925
        %p1927 = scmp.lt.s32.totalorder %s19, 0
        %s1928 = scalar_select %p1927, %s19, 0
        %p1929 = scmp.lt.s32.totalorder %s20, 1
        %s1930 = scalar_select %p1929, %s20, 1
        %s1931 = smul.addr %s1928, 2
        %s1932 = sadd.s32 %s1930, %s1931
        %s1933 = smul.addr %s1932, 2
        %s1934 = scalar_lea.vmem %s3, %s1933
        // Predicated region
        $region67: #{basic_block_forward.2} parent=61 // pred_check
          %p1935 = pneg %p99
        $region68: #{basic_block_forward.2} parent=61 // pred_check_branch
          %1937 = sbr.rel (%p1935) target = $region70
        $region69: #{basic_block_forward.2} parent=61 // pred_region
          %s1938 = smul.u32 16, %s19
          %s1939 = smul.addr %s1938, 2
          %s1940 = sadd.s32 %s20, %s1939
          %s1941 = smul.addr %s1940, 8
          %s1942 = scalar_lea.vmem %s2, %s1941
          // Predicated region
          $region71: #{basic_block_forward.2} parent=69 // pred_check
            _
          $region72: #{basic_block_forward.2} parent=69 // pred_check_branch
            %1944 = sbr.rel (0) target = $region74
          $region73: #{basic_block_forward.2} parent=69 // pred_region
            // Predicated region
            $region75: #{basic_block_forward.2} parent=73 // pred_check
              _
            $region76: #{basic_block_forward.2} parent=73 // pred_check_branch
              %1946 = sbr.rel (0) target = $region78
            $region77: #{basic_block_forward.2} parent=73 // pred_region
              // Predicated region
              $region90: #{basic_block_forward.2} parent=77 // pred_check
                _
              $region91: #{basic_block_forward.2} parent=77 // pred_check_branch
                %1992 = sbr.rel (0) target = $region93
              $region92: #{basic_block_forward.2} parent=77 // pred_region
                loop: start=0, step=1, limit=1
                $region94: #{basic_block_forward.2} parent=92 // loop_pre_header
                  _
                $region95: #{basic_block_forward.2} parent=92 // loop_header
                  %s1994 = sphi 0, %s1998
                  %p1995 = scmp.ge.s32.totalorder %s1994, 1
                  %s1999 = sphi %s1926, %s1926
                  %s2000 = sphi %s1942, %s1942
                $region96: #{basic_block_forward.2} parent=92 // loop_header_branch
                  %1997 = sbr.rel (%p1995) target = $region100
                $region97: #{basic_block_forward.2} parent=92 // loop_body
                  %v2001 = vld [vmem:[%s1999] sm:$0xff]
                  %2002 = vst [vmem:[%s2000] sm:$0xff] %v2001
                  %v2003 = vld [vmem:[%s1999 + $0x8] sm:$0xff]
                  %2004 = vst [vmem:[%s2000 + $0x10] sm:$0xff] %v2003
                  %v2005 = vld [vmem:[%s1999 + $0x10] sm:$0xff]
                  %2006 = vst [vmem:[%s2000 + $0x20] sm:$0xff] %v2005
                  %v2007 = vld [vmem:[%s1999 + $0x18] sm:$0xff]
                  %2008 = vst [vmem:[%s2000 + $0x30] sm:$0xff] %v2007
                  %v2009 = vld [vmem:[%s1999 + $0x20] sm:$0xff]
                  %2010 = vst [vmem:[%s2000 + $0x40] sm:$0xff] %v2009
                  %v2011 = vld [vmem:[%s1999 + $0x28] sm:$0xff]
                  %2012 = vst [vmem:[%s2000 + $0x50] sm:$0xff] %v2011
                  %v2013 = vld [vmem:[%s1999 + $0x30] sm:$0xff]
                  %2014 = vst [vmem:[%s2000 + $0x60] sm:$0xff] %v2013
                  %v2015 = vld [vmem:[%s1999 + $0x38] sm:$0xff]
                  %2016 = vst [vmem:[%s2000 + $0x70] sm:$0xff] %v2015
                  %v2017 = vld [vmem:[%s1999 + $0x40] sm:$0xff]
                  %2018 = vst [vmem:[%s2000 + $0x80] sm:$0xff] %v2017
                  %v2019 = vld [vmem:[%s1999 + $0x48] sm:$0xff]
                  %2020 = vst [vmem:[%s2000 + $0x90] sm:$0xff] %v2019
                  %v2021 = vld [vmem:[%s1999 + $0x50] sm:$0xff]
                  %2022 = vst [vmem:[%s2000 + $0xa0] sm:$0xff] %v2021
                  %v2023 = vld [vmem:[%s1999 + $0x58] sm:$0xff]
                  %2024 = vst [vmem:[%s2000 + $0xb0] sm:$0xff] %v2023
                  %v2025 = vld [vmem:[%s1999 + $0x60] sm:$0xff]
                  %2026 = vst [vmem:[%s2000 + $0xc0] sm:$0xff] %v2025
                  %v2027 = vld [vmem:[%s1999 + $0x68] sm:$0xff]
                  %2028 = vst [vmem:[%s2000 + $0xd0] sm:$0xff] %v2027
                  %v2029 = vld [vmem:[%s1999 + $0x70] sm:$0xff]
                  %2030 = vst [vmem:[%s2000 + $0xe0] sm:$0xff] %v2029
                  %v2031 = vld [vmem:[%s1999 + $0x78] sm:$0xff]
                  %2032 = vst [vmem:[%s2000 + $0xf0] sm:$0xff] %v2031
                $region98: #{basic_block_forward.2} parent=92 // loop_footer
                  %s1998 = sadd.s32 1, %s1994
                $region99: #{basic_block_forward.2} parent=92 // loop_footer_branch
                  %1993 = sbr.rel target = $region95
                $region100: #{basic_block_forward.2} parent=92 // loop_exit
                  _
              $region93: #{basic_block_forward.2} parent=77 // pred_fallthru
                _
              // Predicated region
              $region101: #{basic_block_forward.2} parent=77 // pred_check
                _
              $region102: #{basic_block_forward.2} parent=77 // pred_check_branch
                %2034 = sbr.rel target = $region104
              $region103: #{basic_block_forward.2} parent=77 // pred_region
                _
              $region104: #{basic_block_forward.2} parent=77 // pred_fallthru
                _
            $region78: #{basic_block_forward.2} parent=73 // pred_fallthru
              _
            // Predicated region
            $region79: #{basic_block_forward.2} parent=73 // pred_check
              _
            $region80: #{basic_block_forward.2} parent=73 // pred_check_branch
              %1948 = sbr.rel target = $region82
            $region81: #{basic_block_forward.2} parent=73 // pred_region
              %s1950 = ssub.s32 256, 1
              loop: start=0, step=1, limit=1
              $region83: #{basic_block_forward.2} parent=81 // loop_pre_header
                _
              $region84: #{basic_block_forward.2} parent=81 // loop_header
                %s1952 = sphi 0, %s1956
                %p1953 = scmp.ge.s32.totalorder %s1952, 1
                %s1957 = sphi %s1926, %s1926
                %s1958 = sphi %s1942, %s1942
              $region85: #{basic_block_forward.2} parent=81 // loop_header_branch
                %1955 = sbr.rel (%p1953) target = $region89
              $region86: #{basic_block_forward.2} parent=81 // loop_body
                %v1959 = vld [vmem:[%s1957] sm:%s1950]
                %1960 = vst [vmem:[%s1958] sm:%s1950] %v1959
                %v1961 = vld [vmem:[%s1957 + $0x8] sm:%s1950]
                %1962 = vst [vmem:[%s1958 + $0x10] sm:%s1950] %v1961
                %v1963 = vld [vmem:[%s1957 + $0x10] sm:%s1950]
                %1964 = vst [vmem:[%s1958 + $0x20] sm:%s1950] %v1963
                %v1965 = vld [vmem:[%s1957 + $0x18] sm:%s1950]
                %1966 = vst [vmem:[%s1958 + $0x30] sm:%s1950] %v1965
                %v1967 = vld [vmem:[%s1957 + $0x20] sm:%s1950]
                %1968 = vst [vmem:[%s1958 + $0x40] sm:%s1950] %v1967
                %v1969 = vld [vmem:[%s1957 + $0x28] sm:%s1950]
                %1970 = vst [vmem:[%s1958 + $0x50] sm:%s1950] %v1969
                %v1971 = vld [vmem:[%s1957 + $0x30] sm:%s1950]
                %1972 = vst [vmem:[%s1958 + $0x60] sm:%s1950] %v1971
                %v1973 = vld [vmem:[%s1957 + $0x38] sm:%s1950]
                %1974 = vst [vmem:[%s1958 + $0x70] sm:%s1950] %v1973
                %v1975 = vld [vmem:[%s1957 + $0x40] sm:%s1950]
                %1976 = vst [vmem:[%s1958 + $0x80] sm:%s1950] %v1975
                %v1977 = vld [vmem:[%s1957 + $0x48] sm:%s1950]
                %1978 = vst [vmem:[%s1958 + $0x90] sm:%s1950] %v1977
                %v1979 = vld [vmem:[%s1957 + $0x50] sm:%s1950]
                %1980 = vst [vmem:[%s1958 + $0xa0] sm:%s1950] %v1979
                %v1981 = vld [vmem:[%s1957 + $0x58] sm:%s1950]
                %1982 = vst [vmem:[%s1958 + $0xb0] sm:%s1950] %v1981
                %v1983 = vld [vmem:[%s1957 + $0x60] sm:%s1950]
                %1984 = vst [vmem:[%s1958 + $0xc0] sm:%s1950] %v1983
                %v1985 = vld [vmem:[%s1957 + $0x68] sm:%s1950]
                %1986 = vst [vmem:[%s1958 + $0xd0] sm:%s1950] %v1985
                %v1987 = vld [vmem:[%s1957 + $0x70] sm:%s1950]
                %1988 = vst [vmem:[%s1958 + $0xe0] sm:%s1950] %v1987
                %v1989 = vld [vmem:[%s1957 + $0x78] sm:%s1950]
                %1990 = vst [vmem:[%s1958 + $0xf0] sm:%s1950] %v1989
              $region87: #{basic_block_forward.2} parent=81 // loop_footer
                %s1956 = sadd.s32 1, %s1952
              $region88: #{basic_block_forward.2} parent=81 // loop_footer_branch
                %1951 = sbr.rel target = $region84
              $region89: #{basic_block_forward.2} parent=81 // loop_exit
                _
            $region82: #{basic_block_forward.2} parent=73 // pred_fallthru
              _
          $region74: #{basic_block_forward.2} parent=69 // pred_fallthru
            _
          %2035 = vnop
        $region70: #{basic_block_forward.2} parent=61 // pred_fallthru
          _
        // Predicated region
        $region105: #{basic_block_forward.2} parent=61 // pred_check
          %p2036 = pneg %p127
        $region106: #{basic_block_forward.2} parent=61 // pred_check_branch
          %2038 = sbr.rel (%p2036) target = $region108
        $region107: #{basic_block_forward.2} parent=61 // pred_region
          _
        $region108: #{basic_block_forward.2} parent=61 // pred_fallthru
          _
      $region62: #{basic_block_forward.2} parent=5 // pred_fallthru
        _
      %p2039 = scmp.le.s32.totalorder 2, %s10
      // Predicated region
      $region109: #{basic_block_forward.2} parent=5 // pred_check
        %p2040 = pneg %p2039
      $region110: #{basic_block_forward.2} parent=5 // pred_check_branch
        %2042 = sbr.rel (%p2040) target = $region112
      $region111: #{basic_block_forward.2} parent=5 // pred_region
        %s2043 = ssub.s32 %s10, 2
        // Predicated region
        $region113: #{basic_block_forward.2} parent=111 // pred_check
          %p2044 = pneg %p105
        $region114: #{basic_block_forward.2} parent=111 // pred_check_branch
          %2046 = sbr.rel (%p2044) target = $region116
        $region115: #{basic_block_forward.2} parent=111 // pred_region
          %s2047 = sand.u32 %s90, 1
          %s2048 = sand.u32 %s90, 1
          %s2049 = smul.addr %s2048, 128
          %s2050 = scalar_lea.vmem [#allocation3], %s2049
        $region116: #{basic_block_forward.2} parent=111 // pred_fallthru
          _
        // Predicated region
        $region117: #{basic_block_forward.2} parent=111 // pred_check
          %p2051 = pneg %p133
        $region118: #{basic_block_forward.2} parent=111 // pred_check_branch
          %2053 = sbr.rel (%p2051) target = $region120
        $region119: #{basic_block_forward.2} parent=111 // pred_region
          %p2054 = scmp.lt.s32.totalorder %s21, 0
          %s2055 = scalar_select %p2054, %s21, 0
          %p2056 = scmp.lt.s32.totalorder %s22, 1
          %s2057 = scalar_select %p2056, %s22, 1
          %s2058 = smul.addr %s2055, 2
          %s2059 = sadd.s32 %s2057, %s2058
          %s2060 = smul.addr %s2059, 2
          %s2061 = scalar_lea.vmem %s3, %s2060
        $region120: #{basic_block_forward.2} parent=111 // pred_fallthru
          _
      $region112: #{basic_block_forward.2} parent=5 // pred_fallthru
        _
    $region6: #{basic_block_forward.2} parent=1 // loop_footer
      %s14 = sadd.s32 1, %s10
    $region7: #{basic_block_forward.2} parent=1 // loop_footer_branch
      %9 = sbr.rel target = $region3
    $region8: #{basic_block_forward.2} parent=1 // loop_exit
      _

</llo_original>
